<compile_context>
chip_gen: v6e
topology: v6e:2x2x1
jax: 0.10.0
libtpu: 0.0.40
codegen_flags: <defaults>
</compile_context>

<pallas_src>
import numpy as np
import jax
import jax.numpy as jnp
from jax.experimental import pallas as pl
from jax.experimental.pallas import tpu as pltpu


# ------------------------------------------------------------------ kernel --

def _gather_rows(src, row_ids, tb, cols):
    """Stride-2 conv row gather on the load path (not the MXU).

    src is a (H, TB, cols) ref or value; picks static rows `row_ids` (negative id = the pad-1
    zero row) and concatenates them along sublanes into a lane-dense (len(row_ids)*TB, cols)
    matmul LHS.  TB is a multiple of 8, so every piece is whole sublane tiles.
    """
    parts = [jnp.zeros((tb, cols), jnp.float32) if p < 0 else src[p] for p in row_ids]
    return jnp.concatenate(parts, axis=0)


def _conv_stage(src, m_ref, b_ref):
    """3x3 / stride-2 / pad-1 conv + ReLU as 3 MXU matmuls (Hout*TB, Hin*Cin)@(Hin*Cin, Hout*Cout).

    Column (width) selection, horizontal zero padding and the conv weights are baked into m_ref at
    init time; the vertical row selection is the static gather above.
    """
    hin, tb, cols = src.shape
    hout = hin // 2
    acc = None
    for kh in range(3):
        rows = _gather_rows(src, [2 * ho + kh - 1 for ho in range(hout)], tb, cols)
        d = jnp.dot(rows, m_ref[kh], preferred_element_type=jnp.float32)
        acc = d if acc is None else acc + d
    h = jnp.maximum(acc + b_ref[...], 0.0)            # (hout*TB, Hout*Cout)
    return h.reshape(hout, tb, h.shape[-1])           # sublane-aligned split -> (Hout, TB, Hout*Cout)


def _reward2d_kernel(x_ref,                           # (H0, TB, H0*C0)  one batch tile
                     m1_ref, b1_ref,                  # conv1: (3, H0*C0, H1*C1), (1, H1*C1)
                     m2_ref, b2_ref,                  # conv2: (3, H1*C1, H2*C2), (1, H2*C2)
                     wm1_ref, bm1_ref,                # mlp1 : (H2, H2*C2, D1), (1, D1)  (flatten folded in)
                     wm2_ref, bm2_ref,                # mlp2 : (D1, D2), (1, D2)
                     wm3_ref, bm3_ref,                # mlp3 : (D2, 128) lane-padded, (1, 128)
                     o_ref):                          # (TB, 128)
    f32 = jnp.float32

    h1 = _conv_stage(x_ref, m1_ref, b1_ref)           # (H1, TB, H1*C1)
    h2 = _conv_stage(h1, m2_ref, b2_ref)              # (H2, TB, H2*C2)

    # MLP layer 1: torch's NCHW flatten is pre-baked into wm1's row blocks, so this is H2 full-M
    # matmuls (TB, H2*C2)@(H2*C2, D1) accumulated -- no transpose / reshape at runtime.
    acc = jnp.dot(h2[0], wm1_ref[0], preferred_element_type=f32)
    for r in range(1, h2.shape[0]):
        acc = acc + jnp.dot(h2[r], wm1_ref[r], preferred_element_type=f32)
    a = jnp.maximum(acc + bm1_ref[...], 0.0)                                                    # (TB, D1)
    a = jnp.maximum(jnp.dot(a, wm2_ref[...], preferred_element_type=f32) + bm2_ref[...], 0.0)   # (TB, D2)
    y = jnp.dot(a, wm3_ref[...], preferred_element_type=f32) + bm3_ref[...]                     # (TB, 128)
    # Sigmoid; lane 0 carries the reward, lanes 1..127 are discarded padding (wrapper slices them off).
    o_ref[...] = 1.0 / (1.0 + jnp.exp(-y))


def _resident_spec(shape):
    """Whole-array VMEM-resident block (constant index_map -> fetched once, reused every grid step)."""
    n = len(shape)
    return pl.BlockSpec(shape, lambda i: (0,) * n)


def _round_up(x, m):
    return (x + m - 1) // m * m


def reward2d_forward(x_nchw, params, tile_b=128):
    """x_nchw: (B, Cin, S, S) float32 -> (B, 1) sigmoid reward (== PyTorch Reward2D.forward)."""
    bsz, cin, s, _ = x_nchw.shape
    # NCHW -> (row, batch, width*channels): rows on the gather dim, batch on sublanes, lanes dense.
    x_rows = jnp.transpose(x_nchw, (2, 0, 3, 1)).reshape(s, bsz, s * cin)

    tb = min(_round_up(tile_b, 8), _round_up(bsz, 8))   # batch tile, multiple of 8
    b_pad = _round_up(bsz, tb)
    if b_pad != bsz:
        x_rows = jnp.pad(x_rows, ((0, 0), (0, b_pad - bsz), (0, 0)))

    weight_names = ("m1", "b1", "m2", "b2", "wm1", "bm1", "wm2", "bm2", "wm3", "bm3")
    weights = [params[k] for k in weight_names]

    out = pl.pallas_call(
        _reward2d_kernel,
        out_shape=jax.ShapeDtypeStruct((b_pad, 128), jnp.float32),
        grid=(b_pad // tb,),
        in_specs=[pl.BlockSpec((s, tb, s * cin), lambda i: (0, i, 0))]
                 + [_resident_spec(w.shape) for w in weights],
        out_specs=pl.BlockSpec((tb, 128), lambda i: (i, 0)),
        compiler_params=pltpu.CompilerParams(dimension_semantics=("parallel",)),
    )(x_rows, *weights)
    return out[:bsz, :1]


# ------------------------------------------------------- init-time "baking" --

def _bake_conv(w, bias, hin, hout):
    """Bake one 3x3/stride-2/pad-1 conv into (per-kh column-selector*weight M, bias block).

    Kernel computes  relu( b_blk + sum_kh gather_rows(X, kh) @ M[kh] )  with activations laid out
    as (Hin, TB, Hin*Cin) [column = wi*Cin + c] and output columns [wo*Cout + co].  Horizontal zero
    padding is realised by zero blocks in M; vertical padding by the gather's zero row.
    """
    cin, cout = w.shape[2], w.shape[3]
    m = np.zeros((3, hin * cin, hout * cout), np.float32)
    for kh in range(3):
        for kw in range(3):
            for wo in range(hout):
                wi = 2 * wo + kw - 1
                if 0 <= wi < hin:
                    m[kh, wi * cin:(wi + 1) * cin, wo * cout:(wo + 1) * cout] = w[kh, kw]
    b_blk = np.tile(bias.reshape(1, cout), (1, hout)).astype(np.float32)
    return m, b_blk


def init_params(key, in_channels=2, state_size=16, conv_dims=(32, 64), mlp_dims=(64, 8)):
    """Random init in canonical (PyTorch-like) form + baked kernel form.

    Porting note: real PyTorch weights must be converted first —
      Conv2d.weight (Cout,Cin,3,3) -> transpose to (3,3,Cin,Cout);  Linear.weight (out,in) -> (in,out)
    then passed through the same baking (which also folds the NCHW flatten into wm1 and lane-pads wm3).
    """
    dims = [in_channels, *conv_dims]
    n_down = len(dims) - 1
    assert n_down == 2, "kernel is specialized to the default two DownSampler stages"
    assert len(mlp_dims) == 2, "kernel is specialized to the default 3-layer MLP"
    keys = jax.random.split(key, 2 * n_down + 2 * (len(mlp_dims) + 1))
    ki = iter(keys)

    canon = {"convs": [], "mlp": []}
    for i in range(n_down):
        cin, cout = dims[i], dims[i + 1]
        w = jax.random.normal(next(ki), (3, 3, cin, cout), jnp.float32) * 0.1
        bb = jax.random.normal(next(ki), (cout,), jnp.float32) * 0.01
        canon["convs"].append((w, bb))
    final_size = (state_size // 2 ** n_down) ** 2 * dims[-1]
    mlp_sizes = [final_size, *mlp_dims, 1]
    for i in range(len(mlp_sizes) - 1):
        fin, fout = mlp_sizes[i], mlp_sizes[i + 1]
        w = jax.random.normal(next(ki), (fin, fout), jnp.float32) * float(1.0 / np.sqrt(fin))
        bb = jax.random.normal(next(ki), (1, fout), jnp.float32) * 0.01
        canon["mlp"].append((w, bb))

    baked = {}
    hin = state_size
    for i, (w, bb) in enumerate(canon["convs"]):
        hout = hin // 2
        m, bblk = _bake_conv(np.asarray(w), np.asarray(bb), hin, hout)
        baked[f"m{i + 1}"] = jnp.asarray(m)
        baked[f"b{i + 1}"] = jnp.asarray(bblk)
        hin = hout
    h2, c2, d1, d2 = hin, dims[-1], mlp_dims[0], mlp_dims[1]

    # Fold torch's NCHW flatten into wm1: rows reordered from (c, h, w) order to the kernel's
    # blocked activation order [h][w*C + c].
    wm1, bm1 = canon["mlp"][0]
    wm1_b = (np.asarray(wm1).reshape(c2, h2, h2, d1)
             .transpose(1, 2, 0, 3).reshape(h2, h2 * c2, d1))
    baked["wm1"], baked["bm1"] = jnp.asarray(wm1_b), bm1
    baked["wm2"], baked["bm2"] = canon["mlp"][1]

    # Lane-pad the final Linear to 128 output columns so the kernel's output store is unmasked.
    wm3, bm3 = canon["mlp"][2]
    wm3p = np.zeros((d2, 128), np.float32); wm3p[:, :1] = np.asarray(wm3)
    bm3p = np.zeros((1, 128), np.float32);  bm3p[:, :1] = np.asarray(bm3)
    baked["wm3"], baked["bm3"] = jnp.asarray(wm3p), jnp.asarray(bm3p)
    return baked, canon


# --------------------------------------------------- pure-JAX reference (check) --

def _reference_forward(x_nchw, canon):
    hp = jax.lax.Precision.HIGHEST
    h = jnp.transpose(x_nchw, (0, 2, 3, 1))                       # NHWC
    for w, bb in canon["convs"]:
        h = jax.lax.conv_general_dilated(
            h, w, window_strides=(2, 2), padding=((1, 1), (1, 1)),
            dimension_numbers=("NHWC", "HWIO", "NHWC"), precision=hp)
        h = jnp.maximum(h + bb, 0.0)
    h = jnp.transpose(h, (0, 3, 1, 2)).reshape(h.shape[0], -1)    # torch.reshape on NCHW
    (w1, b1), (w2, b2), (w3, b3) = canon["mlp"]
    h = jnp.maximum(jnp.dot(h, w1, precision=hp) + b1, 0.0)
    h = jnp.maximum(jnp.dot(h, w2, precision=hp) + b2, 0.0)
    return jax.nn.sigmoid(jnp.dot(h, w3, precision=hp) + b3)


# --------------------------------------------------------------------- main --

if __name__ == "__main__":
    key = jax.random.PRNGKey(0)
    k_param, k_x = jax.random.split(key)

    batch, in_channels, state_size = 16, 2, 16
    params, canon = init_params(k_param, in_channels=in_channels, state_size=state_size)
    x = jax.random.normal(k_x, (batch, in_channels, state_size, state_size), jnp.float32)

    fwd = jax.jit(reward2d_forward, static_argnames=("tile_b",))

    # Single batch tile (whole batch in one grid step).
    out = fwd(x, params, tile_b=128)
    jax.block_until_ready(out)
    assert out.shape == (batch, 1)

    ref = _reference_forward(x, canon)
    assert jnp.allclose(out, ref, atol=2e-3, rtol=0.0), (out, ref)

    # Also exercise the multi-step grid (+ parallel dimension semantics) with a smaller tile.
    out2 = fwd(x, params, tile_b=8)
    jax.block_until_ready(out2)
    assert jnp.allclose(out2, ref, atol=2e-3, rtol=0.0), (out2, ref)

    print("KERNEL_OK")
</pallas_src>

<mosaic_0001>
module attributes {stable_mosaic.version = 11 : i64} {
  func.func @_reward2d_kernel(%arg0: i32, %arg1: memref<16x16x32xf32, #tpu.memory_space<vmem>>, %arg2: memref<3x32x256xf32, #tpu.memory_space<vmem>>, %arg3: memref<1x256xf32, #tpu.memory_space<vmem>>, %arg4: memref<3x256x256xf32, #tpu.memory_space<vmem>>, %arg5: memref<1x256xf32, #tpu.memory_space<vmem>>, %arg6: memref<4x256x64xf32, #tpu.memory_space<vmem>>, %arg7: memref<1x64xf32, #tpu.memory_space<vmem>>, %arg8: memref<64x8xf32, #tpu.memory_space<vmem>>, %arg9: memref<1x8xf32, #tpu.memory_space<vmem>>, %arg10: memref<8x128xf32, #tpu.memory_space<vmem>>, %arg11: memref<1x128xf32, #tpu.memory_space<vmem>>, %arg12: memref<16x128xf32, #tpu.memory_space<vmem>>) attributes {dimension_semantics = [#tpu.dimension_semantics<parallel>], iteration_bounds = array<i64: 1>, scalar_prefetch = 0 : i64, scratch_operands = 0 : i64, tpu.core_type = #tpu.core_type<tc>, window_params = [{transform_indices = @transform_0, window_bounds = array<i64: 16, 16, 32>}, {pipeline_mode = #tpu.pipeline_mode<synchronous>, transform_indices = @transform_1, window_bounds = array<i64: 3, 32, 256>}, {pipeline_mode = #tpu.pipeline_mode<synchronous>, transform_indices = @transform_2, window_bounds = array<i64: 1, 256>}, {pipeline_mode = #tpu.pipeline_mode<synchronous>, transform_indices = @transform_3, window_bounds = array<i64: 3, 256, 256>}, {pipeline_mode = #tpu.pipeline_mode<synchronous>, transform_indices = @transform_4, window_bounds = array<i64: 1, 256>}, {pipeline_mode = #tpu.pipeline_mode<synchronous>, transform_indices = @transform_5, window_bounds = array<i64: 4, 256, 64>}, {pipeline_mode = #tpu.pipeline_mode<synchronous>, transform_indices = @transform_6, window_bounds = array<i64: 1, 64>}, {pipeline_mode = #tpu.pipeline_mode<synchronous>, transform_indices = @transform_7, window_bounds = array<i64: 64, 8>}, {pipeline_mode = #tpu.pipeline_mode<synchronous>, transform_indices = @transform_8, window_bounds = array<i64: 1, 8>}, {pipeline_mode = #tpu.pipeline_mode<synchronous>, transform_indices = @transform_9, window_bounds = array<i64: 8, 128>}, {pipeline_mode = #tpu.pipeline_mode<synchronous>, transform_indices = @transform_10, window_bounds = array<i64: 1, 128>}, {transform_indices = @transform_11, window_bounds = array<i64: 16, 128>}]} {
    %cst = arith.constant 0.000000e+00 : f32
    %0 = vector.broadcast %cst : f32 to vector<16x32xf32>
    %c1 = arith.constant 1 : index
    %c0 = arith.constant 0 : index
    %c0_0 = arith.constant 0 : index
    %1 = vector.load %arg1[%c1, %c0, %c0_0] : memref<16x16x32xf32, #tpu.memory_space<vmem>>, vector<1x16x32xf32>
    %2 = vector.shape_cast %1 : vector<1x16x32xf32> to vector<16x32xf32>
    %c3 = arith.constant 3 : index
    %c0_1 = arith.constant 0 : index
    %c0_2 = arith.constant 0 : index
    %3 = vector.load %arg1[%c3, %c0_1, %c0_2] : memref<16x16x32xf32, #tpu.memory_space<vmem>>, vector<1x16x32xf32>
    %4 = vector.shape_cast %3 : vector<1x16x32xf32> to vector<16x32xf32>
    %c5 = arith.constant 5 : index
    %c0_3 = arith.constant 0 : index
    %c0_4 = arith.constant 0 : index
    %5 = vector.load %arg1[%c5, %c0_3, %c0_4] : memref<16x16x32xf32, #tpu.memory_space<vmem>>, vector<1x16x32xf32>
    %6 = vector.shape_cast %5 : vector<1x16x32xf32> to vector<16x32xf32>
    %c7 = arith.constant 7 : index
    %c0_5 = arith.constant 0 : index
    %c0_6 = arith.constant 0 : index
    %7 = vector.load %arg1[%c7, %c0_5, %c0_6] : memref<16x16x32xf32, #tpu.memory_space<vmem>>, vector<1x16x32xf32>
    %8 = vector.shape_cast %7 : vector<1x16x32xf32> to vector<16x32xf32>
    %c9 = arith.constant 9 : index
    %c0_7 = arith.constant 0 : index
    %c0_8 = arith.constant 0 : index
    %9 = vector.load %arg1[%c9, %c0_7, %c0_8] : memref<16x16x32xf32, #tpu.memory_space<vmem>>, vector<1x16x32xf32>
    %10 = vector.shape_cast %9 : vector<1x16x32xf32> to vector<16x32xf32>
    %c11 = arith.constant 11 : index
    %c0_9 = arith.constant 0 : index
    %c0_10 = arith.constant 0 : index
    %11 = vector.load %arg1[%c11, %c0_9, %c0_10] : memref<16x16x32xf32, #tpu.memory_space<vmem>>, vector<1x16x32xf32>
    %12 = vector.shape_cast %11 : vector<1x16x32xf32> to vector<16x32xf32>
    %c13 = arith.constant 13 : index
    %c0_11 = arith.constant 0 : index
    %c0_12 = arith.constant 0 : index
    %13 = vector.load %arg1[%c13, %c0_11, %c0_12] : memref<16x16x32xf32, #tpu.memory_space<vmem>>, vector<1x16x32xf32>
    %14 = vector.shape_cast %13 : vector<1x16x32xf32> to vector<16x32xf32>
    %15 = tpu.concatenate %0, %2, %4, %6, %8, %10, %12, %14 in 0 : vector<16x32xf32>, vector<16x32xf32>, vector<16x32xf32>, vector<16x32xf32>, vector<16x32xf32>, vector<16x32xf32>, vector<16x32xf32>, vector<16x32xf32> -> vector<128x32xf32>
    %c0_13 = arith.constant 0 : index
    %c0_14 = arith.constant 0 : index
    %c0_15 = arith.constant 0 : index
    %16 = vector.load %arg2[%c0_13, %c0_14, %c0_15] : memref<3x32x256xf32, #tpu.memory_space<vmem>>, vector<1x32x256xf32>
    %17 = vector.shape_cast %16 : vector<1x32x256xf32> to vector<32x256xf32>
    %cst_16 = arith.constant dense<0.000000e+00> : vector<128x256xf32>
    %18 = tpu.matmul %15, %17, %cst_16 {dimension_numbers = #tpu.dot_dimension_numbers<[1], [0], [0], [1], [0, 0, 1, 1], [], []>} : vector<128x32xf32>, vector<32x256xf32>, vector<128x256xf32> -> vector<128x256xf32>
    %c0_17 = arith.constant 0 : index
    %c0_18 = arith.constant 0 : index
    %c0_19 = arith.constant 0 : index
    %19 = vector.load %arg1[%c0_17, %c0_18, %c0_19] : memref<16x16x32xf32, #tpu.memory_space<vmem>>, vector<1x16x32xf32>
    %20 = vector.shape_cast %19 : vector<1x16x32xf32> to vector<16x32xf32>
    %c2 = arith.constant 2 : index
    %c0_20 = arith.constant 0 : index
    %c0_21 = arith.constant 0 : index
    %21 = vector.load %arg1[%c2, %c0_20, %c0_21] : memref<16x16x32xf32, #tpu.memory_space<vmem>>, vector<1x16x32xf32>
    %22 = vector.shape_cast %21 : vector<1x16x32xf32> to vector<16x32xf32>
    %c4 = arith.constant 4 : index
    %c0_22 = arith.constant 0 : index
    %c0_23 = arith.constant 0 : index
    %23 = vector.load %arg1[%c4, %c0_22, %c0_23] : memref<16x16x32xf32, #tpu.memory_space<vmem>>, vector<1x16x32xf32>
    %24 = vector.shape_cast %23 : vector<1x16x32xf32> to vector<16x32xf32>
    %c6 = arith.constant 6 : index
    %c0_24 = arith.constant 0 : index
    %c0_25 = arith.constant 0 : index
    %25 = vector.load %arg1[%c6, %c0_24, %c0_25] : memref<16x16x32xf32, #tpu.memory_space<vmem>>, vector<1x16x32xf32>
    %26 = vector.shape_cast %25 : vector<1x16x32xf32> to vector<16x32xf32>
    %c8 = arith.constant 8 : index
    %c0_26 = arith.constant 0 : index
    %c0_27 = arith.constant 0 : index
    %27 = vector.load %arg1[%c8, %c0_26, %c0_27] : memref<16x16x32xf32, #tpu.memory_space<vmem>>, vector<1x16x32xf32>
    %28 = vector.shape_cast %27 : vector<1x16x32xf32> to vector<16x32xf32>
    %c10 = arith.constant 10 : index
    %c0_28 = arith.constant 0 : index
    %c0_29 = arith.constant 0 : index
    %29 = vector.load %arg1[%c10, %c0_28, %c0_29] : memref<16x16x32xf32, #tpu.memory_space<vmem>>, vector<1x16x32xf32>
    %30 = vector.shape_cast %29 : vector<1x16x32xf32> to vector<16x32xf32>
    %c12 = arith.constant 12 : index
    %c0_30 = arith.constant 0 : index
    %c0_31 = arith.constant 0 : index
    %31 = vector.load %arg1[%c12, %c0_30, %c0_31] : memref<16x16x32xf32, #tpu.memory_space<vmem>>, vector<1x16x32xf32>
    %32 = vector.shape_cast %31 : vector<1x16x32xf32> to vector<16x32xf32>
    %c14 = arith.constant 14 : index
    %c0_32 = arith.constant 0 : index
    %c0_33 = arith.constant 0 : index
    %33 = vector.load %arg1[%c14, %c0_32, %c0_33] : memref<16x16x32xf32, #tpu.memory_space<vmem>>, vector<1x16x32xf32>
    %34 = vector.shape_cast %33 : vector<1x16x32xf32> to vector<16x32xf32>
    %35 = tpu.concatenate %20, %22, %24, %26, %28, %30, %32, %34 in 0 : vector<16x32xf32>, vector<16x32xf32>, vector<16x32xf32>, vector<16x32xf32>, vector<16x32xf32>, vector<16x32xf32>, vector<16x32xf32>, vector<16x32xf32> -> vector<128x32xf32>
    %c1_34 = arith.constant 1 : index
    %c0_35 = arith.constant 0 : index
    %c0_36 = arith.constant 0 : index
    %36 = vector.load %arg2[%c1_34, %c0_35, %c0_36] : memref<3x32x256xf32, #tpu.memory_space<vmem>>, vector<1x32x256xf32>
    %37 = vector.shape_cast %36 : vector<1x32x256xf32> to vector<32x256xf32>
    %cst_37 = arith.constant dense<0.000000e+00> : vector<128x256xf32>
    %38 = tpu.matmul %35, %37, %cst_37 {dimension_numbers = #tpu.dot_dimension_numbers<[1], [0], [0], [1], [0, 0, 1, 1], [], []>} : vector<128x32xf32>, vector<32x256xf32>, vector<128x256xf32> -> vector<128x256xf32>
    %39 = arith.addf %18, %38 : vector<128x256xf32>
    %c1_38 = arith.constant 1 : index
    %c0_39 = arith.constant 0 : index
    %c0_40 = arith.constant 0 : index
    %40 = vector.load %arg1[%c1_38, %c0_39, %c0_40] : memref<16x16x32xf32, #tpu.memory_space<vmem>>, vector<1x16x32xf32>
    %41 = vector.shape_cast %40 : vector<1x16x32xf32> to vector<16x32xf32>
    %c3_41 = arith.constant 3 : index
    %c0_42 = arith.constant 0 : index
    %c0_43 = arith.constant 0 : index
    %42 = vector.load %arg1[%c3_41, %c0_42, %c0_43] : memref<16x16x32xf32, #tpu.memory_space<vmem>>, vector<1x16x32xf32>
    %43 = vector.shape_cast %42 : vector<1x16x32xf32> to vector<16x32xf32>
    %c5_44 = arith.constant 5 : index
    %c0_45 = arith.constant 0 : index
    %c0_46 = arith.constant 0 : index
    %44 = vector.load %arg1[%c5_44, %c0_45, %c0_46] : memref<16x16x32xf32, #tpu.memory_space<vmem>>, vector<1x16x32xf32>
    %45 = vector.shape_cast %44 : vector<1x16x32xf32> to vector<16x32xf32>
    %c7_47 = arith.constant 7 : index
    %c0_48 = arith.constant 0 : index
    %c0_49 = arith.constant 0 : index
    %46 = vector.load %arg1[%c7_47, %c0_48, %c0_49] : memref<16x16x32xf32, #tpu.memory_space<vmem>>, vector<1x16x32xf32>
    %47 = vector.shape_cast %46 : vector<1x16x32xf32> to vector<16x32xf32>
    %c9_50 = arith.constant 9 : index
    %c0_51 = arith.constant 0 : index
    %c0_52 = arith.constant 0 : index
    %48 = vector.load %arg1[%c9_50, %c0_51, %c0_52] : memref<16x16x32xf32, #tpu.memory_space<vmem>>, vector<1x16x32xf32>
    %49 = vector.shape_cast %48 : vector<1x16x32xf32> to vector<16x32xf32>
    %c11_53 = arith.constant 11 : index
    %c0_54 = arith.constant 0 : index
    %c0_55 = arith.constant 0 : index
    %50 = vector.load %arg1[%c11_53, %c0_54, %c0_55] : memref<16x16x32xf32, #tpu.memory_space<vmem>>, vector<1x16x32xf32>
    %51 = vector.shape_cast %50 : vector<1x16x32xf32> to vector<16x32xf32>
    %c13_56 = arith.constant 13 : index
    %c0_57 = arith.constant 0 : index
    %c0_58 = arith.constant 0 : index
    %52 = vector.load %arg1[%c13_56, %c0_57, %c0_58] : memref<16x16x32xf32, #tpu.memory_space<vmem>>, vector<1x16x32xf32>
    %53 = vector.shape_cast %52 : vector<1x16x32xf32> to vector<16x32xf32>
    %c15 = arith.constant 15 : index
    %c0_59 = arith.constant 0 : index
    %c0_60 = arith.constant 0 : index
    %54 = vector.load %arg1[%c15, %c0_59, %c0_60] : memref<16x16x32xf32, #tpu.memory_space<vmem>>, vector<1x16x32xf32>
    %55 = vector.shape_cast %54 : vector<1x16x32xf32> to vector<16x32xf32>
    %56 = tpu.concatenate %41, %43, %45, %47, %49, %51, %53, %55 in 0 : vector<16x32xf32>, vector<16x32xf32>, vector<16x32xf32>, vector<16x32xf32>, vector<16x32xf32>, vector<16x32xf32>, vector<16x32xf32>, vector<16x32xf32> -> vector<128x32xf32>
    %c2_61 = arith.constant 2 : index
    %c0_62 = arith.constant 0 : index
    %c0_63 = arith.constant 0 : index
    %57 = vector.load %arg2[%c2_61, %c0_62, %c0_63] : memref<3x32x256xf32, #tpu.memory_space<vmem>>, vector<1x32x256xf32>
    %58 = vector.shape_cast %57 : vector<1x32x256xf32> to vector<32x256xf32>
    %cst_64 = arith.constant dense<0.000000e+00> : vector<128x256xf32>
    %59 = tpu.matmul %56, %58, %cst_64 {dimension_numbers = #tpu.dot_dimension_numbers<[1], [0], [0], [1], [0, 0, 1, 1], [], []>} : vector<128x32xf32>, vector<32x256xf32>, vector<128x256xf32> -> vector<128x256xf32>
    %60 = arith.addf %39, %59 : vector<128x256xf32>
    %c0_65 = arith.constant 0 : index
    %c0_66 = arith.constant 0 : index
    %61 = vector.load %arg3[%c0_65, %c0_66] : memref<1x256xf32, #tpu.memory_space<vmem>>, vector<1x256xf32>
    %62 = vector.broadcast %61 : vector<1x256xf32> to vector<128x256xf32>
    %63 = arith.addf %60, %62 : vector<128x256xf32>
    %cst_67 = arith.constant 0.000000e+00 : f32
    %64 = vector.broadcast %cst_67 : f32 to vector<128x256xf32>
    %65 = arith.maximumf %63, %64 : vector<128x256xf32>
    %66 = vector.shape_cast %65 : vector<128x256xf32> to vector<8x16x256xf32>
    %cst_68 = arith.constant 0.000000e+00 : f32
    %67 = vector.broadcast %cst_68 : f32 to vector<16x256xf32>
    %68 = vector.extract_strided_slice %66 {offsets = [1, 0, 0], sizes = [1, 16, 256], strides = [1, 1, 1]} : vector<8x16x256xf32> to vector<1x16x256xf32>
    %69 = vector.shape_cast %68 : vector<1x16x256xf32> to vector<16x256xf32>
    %70 = vector.extract_strided_slice %66 {offsets = [3, 0, 0], sizes = [1, 16, 256], strides = [1, 1, 1]} : vector<8x16x256xf32> to vector<1x16x256xf32>
    %71 = vector.shape_cast %70 : vector<1x16x256xf32> to vector<16x256xf32>
    %72 = vector.extract_strided_slice %66 {offsets = [5, 0, 0], sizes = [1, 16, 256], strides = [1, 1, 1]} : vector<8x16x256xf32> to vector<1x16x256xf32>
    %73 = vector.shape_cast %72 : vector<1x16x256xf32> to vector<16x256xf32>
    %74 = tpu.concatenate %67, %69, %71, %73 in 0 : vector<16x256xf32>, vector<16x256xf32>, vector<16x256xf32>, vector<16x256xf32> -> vector<64x256xf32>
    %c0_69 = arith.constant 0 : index
    %c0_70 = arith.constant 0 : index
    %c0_71 = arith.constant 0 : index
    %75 = vector.load %arg4[%c0_69, %c0_70, %c0_71] : memref<3x256x256xf32, #tpu.memory_space<vmem>>, vector<1x256x256xf32>
    %76 = vector.shape_cast %75 : vector<1x256x256xf32> to vector<256x256xf32>
    %cst_72 = arith.constant dense<0.000000e+00> : vector<64x256xf32>
    %77 = tpu.matmul %74, %76, %cst_72 {dimension_numbers = #tpu.dot_dimension_numbers<[1], [0], [0], [1], [0, 0, 1, 1], [], []>} : vector<64x256xf32>, vector<256x256xf32>, vector<64x256xf32> -> vector<64x256xf32>
    %78 = vector.extract_strided_slice %66 {offsets = [0, 0, 0], sizes = [1, 16, 256], strides = [1, 1, 1]} : vector<8x16x256xf32> to vector<1x16x256xf32>
    %79 = vector.shape_cast %78 : vector<1x16x256xf32> to vector<16x256xf32>
    %80 = vector.extract_strided_slice %66 {offsets = [2, 0, 0], sizes = [1, 16, 256], strides = [1, 1, 1]} : vector<8x16x256xf32> to vector<1x16x256xf32>
    %81 = vector.shape_cast %80 : vector<1x16x256xf32> to vector<16x256xf32>
    %82 = vector.extract_strided_slice %66 {offsets = [4, 0, 0], sizes = [1, 16, 256], strides = [1, 1, 1]} : vector<8x16x256xf32> to vector<1x16x256xf32>
    %83 = vector.shape_cast %82 : vector<1x16x256xf32> to vector<16x256xf32>
    %84 = vector.extract_strided_slice %66 {offsets = [6, 0, 0], sizes = [1, 16, 256], strides = [1, 1, 1]} : vector<8x16x256xf32> to vector<1x16x256xf32>
    %85 = vector.shape_cast %84 : vector<1x16x256xf32> to vector<16x256xf32>
    %86 = tpu.concatenate %79, %81, %83, %85 in 0 : vector<16x256xf32>, vector<16x256xf32>, vector<16x256xf32>, vector<16x256xf32> -> vector<64x256xf32>
    %c1_73 = arith.constant 1 : index
    %c0_74 = arith.constant 0 : index
    %c0_75 = arith.constant 0 : index
    %87 = vector.load %arg4[%c1_73, %c0_74, %c0_75] : memref<3x256x256xf32, #tpu.memory_space<vmem>>, vector<1x256x256xf32>
    %88 = vector.shape_cast %87 : vector<1x256x256xf32> to vector<256x256xf32>
    %cst_76 = arith.constant dense<0.000000e+00> : vector<64x256xf32>
    %89 = tpu.matmul %86, %88, %cst_76 {dimension_numbers = #tpu.dot_dimension_numbers<[1], [0], [0], [1], [0, 0, 1, 1], [], []>} : vector<64x256xf32>, vector<256x256xf32>, vector<64x256xf32> -> vector<64x256xf32>
    %90 = arith.addf %77, %89 : vector<64x256xf32>
    %91 = vector.extract_strided_slice %66 {offsets = [1, 0, 0], sizes = [1, 16, 256], strides = [1, 1, 1]} : vector<8x16x256xf32> to vector<1x16x256xf32>
    %92 = vector.shape_cast %91 : vector<1x16x256xf32> to vector<16x256xf32>
    %93 = vector.extract_strided_slice %66 {offsets = [3, 0, 0], sizes = [1, 16, 256], strides = [1, 1, 1]} : vector<8x16x256xf32> to vector<1x16x256xf32>
    %94 = vector.shape_cast %93 : vector<1x16x256xf32> to vector<16x256xf32>
    %95 = vector.extract_strided_slice %66 {offsets = [5, 0, 0], sizes = [1, 16, 256], strides = [1, 1, 1]} : vector<8x16x256xf32> to vector<1x16x256xf32>
    %96 = vector.shape_cast %95 : vector<1x16x256xf32> to vector<16x256xf32>
    %97 = vector.extract_strided_slice %66 {offsets = [7, 0, 0], sizes = [1, 16, 256], strides = [1, 1, 1]} : vector<8x16x256xf32> to vector<1x16x256xf32>
    %98 = vector.shape_cast %97 : vector<1x16x256xf32> to vector<16x256xf32>
    %99 = tpu.concatenate %92, %94, %96, %98 in 0 : vector<16x256xf32>, vector<16x256xf32>, vector<16x256xf32>, vector<16x256xf32> -> vector<64x256xf32>
    %c2_77 = arith.constant 2 : index
    %c0_78 = arith.constant 0 : index
    %c0_79 = arith.constant 0 : index
    %100 = vector.load %arg4[%c2_77, %c0_78, %c0_79] : memref<3x256x256xf32, #tpu.memory_space<vmem>>, vector<1x256x256xf32>
    %101 = vector.shape_cast %100 : vector<1x256x256xf32> to vector<256x256xf32>
    %cst_80 = arith.constant dense<0.000000e+00> : vector<64x256xf32>
    %102 = tpu.matmul %99, %101, %cst_80 {dimension_numbers = #tpu.dot_dimension_numbers<[1], [0], [0], [1], [0, 0, 1, 1], [], []>} : vector<64x256xf32>, vector<256x256xf32>, vector<64x256xf32> -> vector<64x256xf32>
    %103 = arith.addf %90, %102 : vector<64x256xf32>
    %c0_81 = arith.constant 0 : index
    %c0_82 = arith.constant 0 : index
    %104 = vector.load %arg5[%c0_81, %c0_82] : memref<1x256xf32, #tpu.memory_space<vmem>>, vector<1x256xf32>
    %105 = vector.broadcast %104 : vector<1x256xf32> to vector<64x256xf32>
    %106 = arith.addf %103, %105 : vector<64x256xf32>
    %cst_83 = arith.constant 0.000000e+00 : f32
    %107 = vector.broadcast %cst_83 : f32 to vector<64x256xf32>
    %108 = arith.maximumf %106, %107 : vector<64x256xf32>
    %109 = vector.shape_cast %108 : vector<64x256xf32> to vector<4x16x256xf32>
    %110 = vector.extract_strided_slice %109 {offsets = [0, 0, 0], sizes = [1, 16, 256], strides = [1, 1, 1]} : vector<4x16x256xf32> to vector<1x16x256xf32>
    %111 = vector.shape_cast %110 : vector<1x16x256xf32> to vector<16x256xf32>
    %c0_84 = arith.constant 0 : index
    %c0_85 = arith.constant 0 : index
    %c0_86 = arith.constant 0 : index
    %112 = vector.load %arg6[%c0_84, %c0_85, %c0_86] : memref<4x256x64xf32, #tpu.memory_space<vmem>>, vector<1x256x64xf32>
    %113 = vector.shape_cast %112 : vector<1x256x64xf32> to vector<256x64xf32>
    %cst_87 = arith.constant dense<0.000000e+00> : vector<16x64xf32>
    %114 = tpu.matmul %111, %113, %cst_87 {dimension_numbers = #tpu.dot_dimension_numbers<[1], [0], [0], [1], [0, 0, 1, 1], [], []>} : vector<16x256xf32>, vector<256x64xf32>, vector<16x64xf32> -> vector<16x64xf32>
    %115 = vector.extract_strided_slice %109 {offsets = [1, 0, 0], sizes = [1, 16, 256], strides = [1, 1, 1]} : vector<4x16x256xf32> to vector<1x16x256xf32>
    %116 = vector.shape_cast %115 : vector<1x16x256xf32> to vector<16x256xf32>
    %c1_88 = arith.constant 1 : index
    %c0_89 = arith.constant 0 : index
    %c0_90 = arith.constant 0 : index
    %117 = vector.load %arg6[%c1_88, %c0_89, %c0_90] : memref<4x256x64xf32, #tpu.memory_space<vmem>>, vector<1x256x64xf32>
    %118 = vector.shape_cast %117 : vector<1x256x64xf32> to vector<256x64xf32>
    %cst_91 = arith.constant dense<0.000000e+00> : vector<16x64xf32>
    %119 = tpu.matmul %116, %118, %cst_91 {dimension_numbers = #tpu.dot_dimension_numbers<[1], [0], [0], [1], [0, 0, 1, 1], [], []>} : vector<16x256xf32>, vector<256x64xf32>, vector<16x64xf32> -> vector<16x64xf32>
    %120 = arith.addf %114, %119 : vector<16x64xf32>
    %121 = vector.extract_strided_slice %109 {offsets = [2, 0, 0], sizes = [1, 16, 256], strides = [1, 1, 1]} : vector<4x16x256xf32> to vector<1x16x256xf32>
    %122 = vector.shape_cast %121 : vector<1x16x256xf32> to vector<16x256xf32>
    %c2_92 = arith.constant 2 : index
    %c0_93 = arith.constant 0 : index
    %c0_94 = arith.constant 0 : index
    %123 = vector.load %arg6[%c2_92, %c0_93, %c0_94] : memref<4x256x64xf32, #tpu.memory_space<vmem>>, vector<1x256x64xf32>
    %124 = vector.shape_cast %123 : vector<1x256x64xf32> to vector<256x64xf32>
    %cst_95 = arith.constant dense<0.000000e+00> : vector<16x64xf32>
    %125 = tpu.matmul %122, %124, %cst_95 {dimension_numbers = #tpu.dot_dimension_numbers<[1], [0], [0], [1], [0, 0, 1, 1], [], []>} : vector<16x256xf32>, vector<256x64xf32>, vector<16x64xf32> -> vector<16x64xf32>
    %126 = arith.addf %120, %125 : vector<16x64xf32>
    %127 = vector.extract_strided_slice %109 {offsets = [3, 0, 0], sizes = [1, 16, 256], strides = [1, 1, 1]} : vector<4x16x256xf32> to vector<1x16x256xf32>
    %128 = vector.shape_cast %127 : vector<1x16x256xf32> to vector<16x256xf32>
    %c3_96 = arith.constant 3 : index
    %c0_97 = arith.constant 0 : index
    %c0_98 = arith.constant 0 : index
    %129 = vector.load %arg6[%c3_96, %c0_97, %c0_98] : memref<4x256x64xf32, #tpu.memory_space<vmem>>, vector<1x256x64xf32>
    %130 = vector.shape_cast %129 : vector<1x256x64xf32> to vector<256x64xf32>
    %cst_99 = arith.constant dense<0.000000e+00> : vector<16x64xf32>
    %131 = tpu.matmul %128, %130, %cst_99 {dimension_numbers = #tpu.dot_dimension_numbers<[1], [0], [0], [1], [0, 0, 1, 1], [], []>} : vector<16x256xf32>, vector<256x64xf32>, vector<16x64xf32> -> vector<16x64xf32>
    %132 = arith.addf %126, %131 : vector<16x64xf32>
    %c0_100 = arith.constant 0 : index
    %c0_101 = arith.constant 0 : index
    %133 = vector.load %arg7[%c0_100, %c0_101] : memref<1x64xf32, #tpu.memory_space<vmem>>, vector<1x64xf32>
    %134 = vector.broadcast %133 : vector<1x64xf32> to vector<16x64xf32>
    %135 = arith.addf %132, %134 : vector<16x64xf32>
    %cst_102 = arith.constant 0.000000e+00 : f32
    %136 = vector.broadcast %cst_102 : f32 to vector<16x64xf32>
    %137 = arith.maximumf %135, %136 : vector<16x64xf32>
    %c0_103 = arith.constant 0 : index
    %c0_104 = arith.constant 0 : index
    %138 = vector.load %arg8[%c0_103, %c0_104] : memref<64x8xf32, #tpu.memory_space<vmem>>, vector<64x8xf32>
    %cst_105 = arith.constant dense<0.000000e+00> : vector<16x8xf32>
    %139 = tpu.matmul %137, %138, %cst_105 {dimension_numbers = #tpu.dot_dimension_numbers<[1], [0], [0], [1], [0, 0, 1, 1], [], []>} : vector<16x64xf32>, vector<64x8xf32>, vector<16x8xf32> -> vector<16x8xf32>
    %c0_106 = arith.constant 0 : index
    %c0_107 = arith.constant 0 : index
    %140 = vector.load %arg9[%c0_106, %c0_107] : memref<1x8xf32, #tpu.memory_space<vmem>>, vector<1x8xf32>
    %141 = vector.broadcast %140 : vector<1x8xf32> to vector<16x8xf32>
    %142 = arith.addf %139, %141 : vector<16x8xf32>
    %cst_108 = arith.constant 0.000000e+00 : f32
    %143 = vector.broadcast %cst_108 : f32 to vector<16x8xf32>
    %144 = arith.maximumf %142, %143 : vector<16x8xf32>
    %c0_109 = arith.constant 0 : index
    %c0_110 = arith.constant 0 : index
    %145 = vector.load %arg10[%c0_109, %c0_110] : memref<8x128xf32, #tpu.memory_space<vmem>>, vector<8x128xf32>
    %cst_111 = arith.constant dense<0.000000e+00> : vector<16x128xf32>
    %146 = tpu.matmul %144, %145, %cst_111 {dimension_numbers = #tpu.dot_dimension_numbers<[1], [0], [0], [1], [0, 0, 1, 1], [], []>} : vector<16x8xf32>, vector<8x128xf32>, vector<16x128xf32> -> vector<16x128xf32>
    %c0_112 = arith.constant 0 : index
    %c0_113 = arith.constant 0 : index
    %147 = vector.load %arg11[%c0_112, %c0_113] : memref<1x128xf32, #tpu.memory_space<vmem>>, vector<1x128xf32>
    %148 = vector.broadcast %147 : vector<1x128xf32> to vector<16x128xf32>
    %149 = arith.addf %146, %148 : vector<16x128xf32>
    %cst_114 = arith.constant 0.000000e+00 : f32
    %150 = vector.broadcast %cst_114 : f32 to vector<16x128xf32>
    %151 = arith.subf %150, %149 : vector<16x128xf32>
    %152 = math.exp %151 : vector<16x128xf32>
    %cst_115 = arith.constant 1.000000e+00 : f32
    %153 = vector.broadcast %cst_115 : f32 to vector<16x128xf32>
    %154 = arith.addf %153, %152 : vector<16x128xf32>
    %cst_116 = arith.constant 1.000000e+00 : f32
    %155 = vector.broadcast %cst_116 : f32 to vector<16x128xf32>
    %156 = arith.divf %155, %154 : vector<16x128xf32>
    %c0_117 = arith.constant 0 : index
    %c0_118 = arith.constant 0 : index
    %157 = vector.load %arg12[%c0_117, %c0_118] : memref<16x128xf32, #tpu.memory_space<vmem>>, vector<16x128xf32>
    tpu.vector_store %arg12[%c0_117, %c0_118], %156 {strides = array<i32>} : memref<16x128xf32, #tpu.memory_space<vmem>>, vector<16x128xf32>,
    return
  }
  func.func @transform_0(%arg0: i32) -> (i32, i32, i32) {
    %c0_i32 = arith.constant 0 : i32
    %c0_i32_0 = arith.constant 0 : i32
    %c0_i32_1 = arith.constant 0 : i32
    return %c0_i32, %arg0, %c0_i32_0 : i32, i32, i32
  }
  func.func @transform_1(%arg0: i32) -> (i32, i32, i32) {
    %c0_i32 = arith.constant 0 : i32
    %c0_i32_0 = arith.constant 0 : i32
    %c0_i32_1 = arith.constant 0 : i32
    %c0_i32_2 = arith.constant 0 : i32
    return %c0_i32, %c0_i32_0, %c0_i32_1 : i32, i32, i32
  }
  func.func @transform_2(%arg0: i32) -> (i32, i32) {
    %c0_i32 = arith.constant 0 : i32
    %c0_i32_0 = arith.constant 0 : i32
    %c0_i32_1 = arith.constant 0 : i32
    return %c0_i32, %c0_i32_0 : i32, i32
  }
  func.func @transform_3(%arg0: i32) -> (i32, i32, i32) {
    %c0_i32 = arith.constant 0 : i32
    %c0_i32_0 = arith.constant 0 : i32
    %c0_i32_1 = arith.constant 0 : i32
    %c0_i32_2 = arith.constant 0 : i32
    return %c0_i32, %c0_i32_0, %c0_i32_1 : i32, i32, i32
  }
  func.func @transform_4(%arg0: i32) -> (i32, i32) {
    %c0_i32 = arith.constant 0 : i32
    %c0_i32_0 = arith.constant 0 : i32
    %c0_i32_1 = arith.constant 0 : i32
    return %c0_i32, %c0_i32_0 : i32, i32
  }
  func.func @transform_5(%arg0: i32) -> (i32, i32, i32) {
    %c0_i32 = arith.constant 0 : i32
    %c0_i32_0 = arith.constant 0 : i32
    %c0_i32_1 = arith.constant 0 : i32
    %c0_i32_2 = arith.constant 0 : i32
    return %c0_i32, %c0_i32_0, %c0_i32_1 : i32, i32, i32
  }
  func.func @transform_6(%arg0: i32) -> (i32, i32) {
    %c0_i32 = arith.constant 0 : i32
    %c0_i32_0 = arith.constant 0 : i32
    %c0_i32_1 = arith.constant 0 : i32
    return %c0_i32, %c0_i32_0 : i32, i32
  }
  func.func @transform_7(%arg0: i32) -> (i32, i32) {
    %c0_i32 = arith.constant 0 : i32
    %c0_i32_0 = arith.constant 0 : i32
    %c0_i32_1 = arith.constant 0 : i32
    return %c0_i32, %c0_i32_0 : i32, i32
  }
  func.func @transform_8(%arg0: i32) -> (i32, i32) {
    %c0_i32 = arith.constant 0 : i32
    %c0_i32_0 = arith.constant 0 : i32
    %c0_i32_1 = arith.constant 0 : i32
    return %c0_i32, %c0_i32_0 : i32, i32
  }
  func.func @transform_9(%arg0: i32) -> (i32, i32) {
    %c0_i32 = arith.constant 0 : i32
    %c0_i32_0 = arith.constant 0 : i32
    %c0_i32_1 = arith.constant 0 : i32
    return %c0_i32, %c0_i32_0 : i32, i32
  }
  func.func @transform_10(%arg0: i32) -> (i32, i32) {
    %c0_i32 = arith.constant 0 : i32
    %c0_i32_0 = arith.constant 0 : i32
    %c0_i32_1 = arith.constant 0 : i32
    return %c0_i32, %c0_i32_0 : i32, i32
  }
  func.func @transform_11(%arg0: i32) -> (i32, i32) {
    %c0_i32 = arith.constant 0 : i32
    %c0_i32_0 = arith.constant 0 : i32
    return %arg0, %c0_i32 : i32, i32
  }
}

</mosaic_0001>

<llo_original>
// kernel: reward2d_forward.1
$region0: #{reward2d_forward.1}
  #allocation0 [shape = 'u32[]', space=smem, size = 0x4, offset = 0x4, fixed_abs, tag = 'smem constant byte address 0x4 - core index']
  #allocation1 [shape = 'u32[144,128]{1,0:T(1,128)}', space=vmem, size = 0x12000, scoped, tag = 'internal scratch']
  %s0 = inlined_call_operand.vmem [shape: f32[16,16,32], index: 0, kind: input, shape index: {}]
  %s1 = inlined_call_operand.vmem [shape: f32[3,32,256], index: 1, kind: input, shape index: {}]
  %s2 = inlined_call_operand.vmem [shape: f32[1,256], index: 2, kind: input, shape index: {}]
  %s3 = inlined_call_operand.vmem [shape: f32[3,256,256], index: 3, kind: input, shape index: {}]
  %s4 = inlined_call_operand.vmem [shape: f32[1,256], index: 4, kind: input, shape index: {}]
  %s5 = inlined_call_operand.vmem [shape: f32[4,256,64], index: 5, kind: input, shape index: {}]
  %s6 = inlined_call_operand.vmem [shape: f32[1,64], index: 6, kind: input, shape index: {}]
  %s7 = inlined_call_operand.vmem [shape: f32[64,8], index: 7, kind: input, shape index: {}]
  %s8 = inlined_call_operand.vmem [shape: f32[1,8], index: 8, kind: input, shape index: {}]
  %s9 = inlined_call_operand.vmem [shape: f32[8,128], index: 9, kind: input, shape index: {}]
  %s10 = inlined_call_operand.vmem [shape: f32[1,128], index: 10, kind: input, shape index: {}]
  %s11 = inlined_call_operand.vmem [shape: f32[16,128], index: 11, kind: output, shape index: {}]
  %s12 = sld [smem:[#allocation0]]
  $region54: #{reward2d_forward.1} parent=0
    _
  %s14 = ssub.s32 1, %s12
  %s15 = scalar_select 0, %s14, %s12
  // Predicated region
  $region2: #{reward2d_forward.1} parent=0 // pred_check
    _
  $region3: #{reward2d_forward.1} parent=0 // pred_check_branch
    %17 = sbr.rel (0) target = $region5
  $region4: #{reward2d_forward.1} parent=0 // pred_region
    _
  $region5: #{reward2d_forward.1} parent=0 // pred_fallthru
    _
  // Predicated region
  $region6: #{reward2d_forward.1} parent=0 // pred_check
    _
  $region7: #{reward2d_forward.1} parent=0 // pred_check_branch
    %19 = sbr.rel (0) target = $region9
  $region8: #{reward2d_forward.1} parent=0 // pred_region
    _
  $region9: #{reward2d_forward.1} parent=0 // pred_fallthru
    _
  // Predicated region
  $region10: #{reward2d_forward.1} parent=0 // pred_check
    _
  $region11: #{reward2d_forward.1} parent=0 // pred_check_branch
    %21 = sbr.rel (0) target = $region13
  $region12: #{reward2d_forward.1} parent=0 // pred_region
    _
  $region13: #{reward2d_forward.1} parent=0 // pred_fallthru
    _
  // Predicated region
  $region14: #{reward2d_forward.1} parent=0 // pred_check
    _
  $region15: #{reward2d_forward.1} parent=0 // pred_check_branch
    %23 = sbr.rel (0) target = $region17
  $region16: #{reward2d_forward.1} parent=0 // pred_region
    _
  $region17: #{reward2d_forward.1} parent=0 // pred_fallthru
    _
  // Predicated region
  $region18: #{reward2d_forward.1} parent=0 // pred_check
    _
  $region19: #{reward2d_forward.1} parent=0 // pred_check_branch
    %25 = sbr.rel (0) target = $region21
  $region20: #{reward2d_forward.1} parent=0 // pred_region
    _
  $region21: #{reward2d_forward.1} parent=0 // pred_fallthru
    _
  // Predicated region
  $region22: #{reward2d_forward.1} parent=0 // pred_check
    _
  $region23: #{reward2d_forward.1} parent=0 // pred_check_branch
    %27 = sbr.rel (0) target = $region25
  $region24: #{reward2d_forward.1} parent=0 // pred_region
    _
  $region25: #{reward2d_forward.1} parent=0 // pred_fallthru
    _
  // Predicated region
  $region26: #{reward2d_forward.1} parent=0 // pred_check
    _
  $region27: #{reward2d_forward.1} parent=0 // pred_check_branch
    %29 = sbr.rel (0) target = $region29
  $region28: #{reward2d_forward.1} parent=0 // pred_region
    _
  $region29: #{reward2d_forward.1} parent=0 // pred_fallthru
    _
  // Predicated region
  $region30: #{reward2d_forward.1} parent=0 // pred_check
    _
  $region31: #{reward2d_forward.1} parent=0 // pred_check_branch
    %31 = sbr.rel (0) target = $region33
  $region32: #{reward2d_forward.1} parent=0 // pred_region
    _
  $region33: #{reward2d_forward.1} parent=0 // pred_fallthru
    _
  // Predicated region
  $region34: #{reward2d_forward.1} parent=0 // pred_check
    _
  $region35: #{reward2d_forward.1} parent=0 // pred_check_branch
    %33 = sbr.rel (0) target = $region37
  $region36: #{reward2d_forward.1} parent=0 // pred_region
    _
  $region37: #{reward2d_forward.1} parent=0 // pred_fallthru
    _
  // Predicated region
  $region38: #{reward2d_forward.1} parent=0 // pred_check
    _
  $region39: #{reward2d_forward.1} parent=0 // pred_check_branch
    %35 = sbr.rel (0) target = $region41
  $region40: #{reward2d_forward.1} parent=0 // pred_region
    _
  $region41: #{reward2d_forward.1} parent=0 // pred_fallthru
    _
  // Predicated region
  $region42: #{reward2d_forward.1} parent=0 // pred_check
    _
  $region43: #{reward2d_forward.1} parent=0 // pred_check_branch
    %37 = sbr.rel (0) target = $region45
  $region44: #{reward2d_forward.1} parent=0 // pred_region
    _
  $region45: #{reward2d_forward.1} parent=0 // pred_fallthru
    _
  %s38 = scalar_lea.vmem %s0, 16
  %v39 = vld [vmem:[%s38] sm:$0xff]
  %v40 = vld [vmem:[%s38 + $0x8] sm:$0xff]
  %s41 = scalar_lea.vmem %s0, 48
  %v42 = vld [vmem:[%s41] sm:$0xff]
  %v43 = vld [vmem:[%s41 + $0x8] sm:$0xff]
  %s44 = scalar_lea.vmem %s0, 80
  %v45 = vld [vmem:[%s44] sm:$0xff]
  %v46 = vld [vmem:[%s44 + $0x8] sm:$0xff]
  %s47 = scalar_lea.vmem %s0, 112
  %v48 = vld [vmem:[%s47] sm:$0xff]
  %v49 = vld [vmem:[%s47 + $0x8] sm:$0xff]
  %s50 = scalar_lea.vmem %s0, 144
  %v51 = vld [vmem:[%s50] sm:$0xff]
  %v52 = vld [vmem:[%s50 + $0x8] sm:$0xff]
  %s53 = scalar_lea.vmem %s0, 176
  %v54 = vld [vmem:[%s53] sm:$0xff]
  %v55 = vld [vmem:[%s53 + $0x8] sm:$0xff]
  %s56 = scalar_lea.vmem %s0, 208
  %v57 = vld [vmem:[%s56] sm:$0xff]
  %v58 = vld [vmem:[%s56 + $0x8] sm:$0xff]
  %v59 = vld [vmem:[%s1] sm:$0xff]
  %v60 = vld [vmem:[%s1 + $0x8] sm:$0xff]
  %v61 = vld [vmem:[%s1 + $0x10] sm:$0xff]
  %v62 = vld [vmem:[%s1 + $0x18] sm:$0xff]
  %v63 = vld [vmem:[%s1 + $0x20] sm:$0xff]
  %v64 = vld [vmem:[%s1 + $0x28] sm:$0xff]
  %v65 = vld [vmem:[%s1 + $0x30] sm:$0xff]
  %v66 = vld [vmem:[%s1 + $0x38] sm:$0xff]
  %v67 = vld [vmem:[%s0] sm:$0xff]
  %v68 = vld [vmem:[%s0 + $0x8] sm:$0xff]
  %s69 = scalar_lea.vmem %s0, 32
  %v70 = vld [vmem:[%s69] sm:$0xff]
  %v71 = vld [vmem:[%s69 + $0x8] sm:$0xff]
  %s72 = scalar_lea.vmem %s0, 64
  %v73 = vld [vmem:[%s72] sm:$0xff]
  %v74 = vld [vmem:[%s72 + $0x8] sm:$0xff]
  %s75 = scalar_lea.vmem %s0, 96
  %v76 = vld [vmem:[%s75] sm:$0xff]
  %v77 = vld [vmem:[%s75 + $0x8] sm:$0xff]
  %s78 = scalar_lea.vmem %s0, 128
  %v79 = vld [vmem:[%s78] sm:$0xff]
  %v80 = vld [vmem:[%s78 + $0x8] sm:$0xff]
  %s81 = scalar_lea.vmem %s0, 160
  %v82 = vld [vmem:[%s81] sm:$0xff]
  %v83 = vld [vmem:[%s81 + $0x8] sm:$0xff]
  %s84 = scalar_lea.vmem %s0, 192
  %v85 = vld [vmem:[%s84] sm:$0xff]
  %v86 = vld [vmem:[%s84 + $0x8] sm:$0xff]
  %s87 = scalar_lea.vmem %s0, 224
  %v88 = vld [vmem:[%s87] sm:$0xff]
  %v89 = vld [vmem:[%s87 + $0x8] sm:$0xff]
  %s90 = scalar_lea.vmem %s1, 64
  %v91 = vld [vmem:[%s90] sm:$0xff]
  %v92 = vld [vmem:[%s90 + $0x8] sm:$0xff]
  %v93 = vld [vmem:[%s90 + $0x10] sm:$0xff]
  %v94 = vld [vmem:[%s90 + $0x18] sm:$0xff]
  %v95 = vld [vmem:[%s90 + $0x20] sm:$0xff]
  %v96 = vld [vmem:[%s90 + $0x28] sm:$0xff]
  %v97 = vld [vmem:[%s90 + $0x30] sm:$0xff]
  %v98 = vld [vmem:[%s90 + $0x38] sm:$0xff]
  %vm99 = vcmask 261120
  %v101 = vsel %vm99, %v67, 0
  %v104 = vsel %vm99, %v68, 0
  %v107 = vsel %vm99, %v70, 0
  %v110 = vsel %vm99, %v71, 0
  %v113 = vsel %vm99, %v73, 0
  %v116 = vsel %vm99, %v74, 0
  %v119 = vsel %vm99, %v76, 0
  %v122 = vsel %vm99, %v77, 0
  %v125 = vsel %vm99, %v79, 0
  %v128 = vsel %vm99, %v80, 0
  %v131 = vsel %vm99, %v82, 0
  %v134 = vsel %vm99, %v83, 0
  %v137 = vsel %vm99, %v85, 0
  %v140 = vsel %vm99, %v86, 0
  %v143 = vsel %vm99, %v88, 0
  %v146 = vsel %vm99, %v89, 0
  %148 = vmatprep.subr.mxu0 0.0
  %149 = vmatpush1.msra.mxu0 0.0
  %150 = vmatprep.subr.mxu0 0.0
  %151 = vmatpush1.msra.mxu0 0.0
  %152 = vmatprep.subr.mxu0 0.0
  %153 = vmatpush1.msra.mxu0 0.0
  %154 = vmatprep.subr.mxu0 0.0
  %155 = vmatpush1.msra.mxu0 0.0
  %156 = vmatprep.subr.mxu0 0.0
  %157 = vmatpush1.msra.mxu0 0.0
  %158 = vmatprep.subr.mxu0 0.0
  %159 = vmatpush1.msra.mxu0 0.0
  %160 = vmatprep.subr.mxu0 0.0
  %161 = vmatpush1.msra.mxu0 0.0
  %162 = vmatprep.subr.mxu0 0.0
  %163 = vmatpush1.msra.mxu0 0.0
  %164 = vmatprep.subr.mxu0 0.0
  %165 = vmatpush1.msra.mxu0 0.0
  %166 = vmatprep.subr.mxu0 0.0
  %167 = vmatpush1.msra.mxu0 0.0
  %168 = vmatprep.subr.mxu0 0.0
  %169 = vmatpush1.msra.mxu0 0.0
  %170 = vmatprep.subr.mxu0 0.0
  %171 = vmatpush1.msra.mxu0 0.0
  %172 = vmatprep.subr.mxu0 %v98
  %173 = vmatpush1.msra.mxu0 %v97
  %174 = vmatprep.subr.mxu0 %v96
  %175 = vmatpush1.msra.mxu0 %v95
  %176 = vmatprep.subr.mxu0 %v94
  %177 = vmatpush1.msra.mxu0 %v93
  %178 = vmatprep.subr.mxu0 %v92
  %179 = vmatpush1.msra.mxu0 %v91
  %180 = vmatprep.subr.mxu0 0.0
  %181 = vmatpush2.msra.mxu0 0.0
  %182 = vmatprep.subr.mxu0 0.0
  %183 = vmatpush2.msra.mxu0 0.0
  %184 = vmatprep.subr.mxu0 0.0
  %185 = vmatpush2.msra.mxu0 0.0
  %186 = vmatprep.subr.mxu0 0.0
  %187 = vmatpush2.msra.mxu0 0.0
  %188 = vmatprep.subr.mxu0 0.0
  %189 = vmatpush2.msra.mxu0 0.0
  %190 = vmatprep.subr.mxu0 0.0
  %191 = vmatpush2.msra.mxu0 0.0
  %192 = vmatprep.subr.mxu0 0.0
  %193 = vmatpush2.msra.mxu0 0.0
  %194 = vmatprep.subr.mxu0 0.0
  %195 = vmatpush2.msra.mxu0 0.0
  %196 = vmatprep.subr.mxu0 0.0
  %197 = vmatpush2.msra.mxu0 0.0
  %198 = vmatprep.subr.mxu0 0.0
  %199 = vmatpush2.msra.mxu0 0.0
  %200 = vmatprep.subr.mxu0 0.0
  %201 = vmatpush2.msra.mxu0 0.0
  %202 = vmatprep.subr.mxu0 0.0
  %203 = vmatpush2.msra.mxu0 0.0
  %204 = vmatprep.subr.mxu0 0.0
  %205 = vmatpush2.msra.mxu0 0.0
  %206 = vmatprep.subr.mxu0 0.0
  %207 = vmatpush2.msra.mxu0 0.0
  %208 = vmatprep.subr.mxu0 0.0
  %209 = vmatpush2.msra.mxu0 0.0
  %210 = vmatprep.subr.mxu0 0.0
  %211 = vmatpush2.msra.mxu0 0.0
  %212 = vmatprep.mubr.f32.mxu0 0.0
  %213 = vmatmul.mubr.f32.gmra.mxu0 %v101
  %v214 = vpop.f32.mrf.mxu0
  %v215 = vadd.f32 0.0, %v214
  %v216 = vpop.f32.mrf.mxu0
  %v217 = vadd.f32 0.0, %v216
  %218 = vmatprep.mubr.f32.mxu0 0.0
  %219 = vmatmul.mubr.f32.gmra.mxu0 %v104
  %v220 = vpop.f32.mrf.mxu0
  %v221 = vadd.f32 0.0, %v220
  %v222 = vpop.f32.mrf.mxu0
  %v223 = vadd.f32 0.0, %v222
  %224 = vmatprep.mubr.f32.mxu0 0.0
  %225 = vmatmul.mubr.f32.gmra.mxu0 %v107
  %v226 = vpop.f32.mrf.mxu0
  %v227 = vadd.f32 0.0, %v226
  %v228 = vpop.f32.mrf.mxu0
  %v229 = vadd.f32 0.0, %v228
  %230 = vmatprep.mubr.f32.mxu0 0.0
  %231 = vmatmul.mubr.f32.gmra.mxu0 %v110
  %v232 = vpop.f32.mrf.mxu0
  %v233 = vadd.f32 0.0, %v232
  %v234 = vpop.f32.mrf.mxu0
  %v235 = vadd.f32 0.0, %v234
  %236 = vmatprep.mubr.f32.mxu0 0.0
  %237 = vmatmul.mubr.f32.gmra.mxu0 %v113
  %v238 = vpop.f32.mrf.mxu0
  %v239 = vadd.f32 0.0, %v238
  %v240 = vpop.f32.mrf.mxu0
  %v241 = vadd.f32 0.0, %v240
  %242 = vmatprep.mubr.f32.mxu0 0.0
  %243 = vmatmul.mubr.f32.gmra.mxu0 %v116
  %v244 = vpop.f32.mrf.mxu0
  %v245 = vadd.f32 0.0, %v244
  %v246 = vpop.f32.mrf.mxu0
  %v247 = vadd.f32 0.0, %v246
  %248 = vmatprep.mubr.f32.mxu0 0.0
  %249 = vmatmul.mubr.f32.gmra.mxu0 %v119
  %v250 = vpop.f32.mrf.mxu0
  %v251 = vadd.f32 0.0, %v250
  %v252 = vpop.f32.mrf.mxu0
  %v253 = vadd.f32 0.0, %v252
  %254 = vmatprep.mubr.f32.mxu0 0.0
  %255 = vmatmul.mubr.f32.gmra.mxu0 %v122
  %v256 = vpop.f32.mrf.mxu0
  %v257 = vadd.f32 0.0, %v256
  %v258 = vpop.f32.mrf.mxu0
  %v259 = vadd.f32 0.0, %v258
  %260 = vmatprep.mubr.f32.mxu0 0.0
  %261 = vmatmul.mubr.f32.gmra.mxu0 %v125
  %v262 = vpop.f32.mrf.mxu0
  %v263 = vadd.f32 0.0, %v262
  %v264 = vpop.f32.mrf.mxu0
  %v265 = vadd.f32 0.0, %v264
  %266 = vmatprep.mubr.f32.mxu0 0.0
  %267 = vmatmul.mubr.f32.gmra.mxu0 %v128
  %v268 = vpop.f32.mrf.mxu0
  %v269 = vadd.f32 0.0, %v268
  %v270 = vpop.f32.mrf.mxu0
  %v271 = vadd.f32 0.0, %v270
  %272 = vmatprep.mubr.f32.mxu0 0.0
  %273 = vmatmul.mubr.f32.gmra.mxu0 %v131
  %v274 = vpop.f32.mrf.mxu0
  %v275 = vadd.f32 0.0, %v274
  %v276 = vpop.f32.mrf.mxu0
  %v277 = vadd.f32 0.0, %v276
  %278 = vmatprep.mubr.f32.mxu0 0.0
  %279 = vmatmul.mubr.f32.gmra.mxu0 %v134
  %v280 = vpop.f32.mrf.mxu0
  %v281 = vadd.f32 0.0, %v280
  %v282 = vpop.f32.mrf.mxu0
  %v283 = vadd.f32 0.0, %v282
  %284 = vmatprep.mubr.f32.mxu0 0.0
  %285 = vmatmul.mubr.f32.gmra.mxu0 %v137
  %v286 = vpop.f32.mrf.mxu0
  %v287 = vadd.f32 0.0, %v286
  %v288 = vpop.f32.mrf.mxu0
  %v289 = vadd.f32 0.0, %v288
  %290 = vmatprep.mubr.f32.mxu0 0.0
  %291 = vmatmul.mubr.f32.gmra.mxu0 %v140
  %v292 = vpop.f32.mrf.mxu0
  %v293 = vadd.f32 0.0, %v292
  %v294 = vpop.f32.mrf.mxu0
  %v295 = vadd.f32 0.0, %v294
  %296 = vmatprep.mubr.f32.mxu0 0.0
  %297 = vmatmul.mubr.f32.gmra.mxu0 %v143
  %v298 = vpop.f32.mrf.mxu0
  %v299 = vadd.f32 0.0, %v298
  %v300 = vpop.f32.mrf.mxu0
  %v301 = vadd.f32 0.0, %v300
  %302 = vmatprep.mubr.f32.mxu0 0.0
  %303 = vmatmul.mubr.f32.gmra.mxu0 %v146
  %v304 = vpop.f32.mrf.mxu0
  %v305 = vadd.f32 0.0, %v304
  %v306 = vpop.f32.mrf.mxu0
  %v307 = vadd.f32 0.0, %v306
  %308 = vdwg.mxu0
  %v310 = vsel %vm99, 0.0, 0
  %v313 = vsel %vm99, %v39, 0
  %v316 = vsel %vm99, %v40, 0
  %v319 = vsel %vm99, %v42, 0
  %v322 = vsel %vm99, %v43, 0
  %v325 = vsel %vm99, %v45, 0
  %v328 = vsel %vm99, %v46, 0
  %v331 = vsel %vm99, %v48, 0
  %v334 = vsel %vm99, %v49, 0
  %v337 = vsel %vm99, %v51, 0
  %v340 = vsel %vm99, %v52, 0
  %v343 = vsel %vm99, %v54, 0
  %v346 = vsel %vm99, %v55, 0
  %v349 = vsel %vm99, %v57, 0
  %v352 = vsel %vm99, %v58, 0
  %354 = vmatprep.subr.mxu0 0.0
  %355 = vmatpush1.msra.mxu0 0.0
  %356 = vmatprep.subr.mxu0 0.0
  %357 = vmatpush1.msra.mxu0 0.0
  %358 = vmatprep.subr.mxu0 0.0
  %359 = vmatpush1.msra.mxu0 0.0
  %360 = vmatprep.subr.mxu0 0.0
  %361 = vmatpush1.msra.mxu0 0.0
  %362 = vmatprep.subr.mxu0 0.0
  %363 = vmatpush1.msra.mxu0 0.0
  %364 = vmatprep.subr.mxu0 0.0
  %365 = vmatpush1.msra.mxu0 0.0
  %366 = vmatprep.subr.mxu0 0.0
  %367 = vmatpush1.msra.mxu0 0.0
  %368 = vmatprep.subr.mxu0 0.0
  %369 = vmatpush1.msra.mxu0 0.0
  %370 = vmatprep.subr.mxu0 0.0
  %371 = vmatpush1.msra.mxu0 0.0
  %372 = vmatprep.subr.mxu0 0.0
  %373 = vmatpush1.msra.mxu0 0.0
  %374 = vmatprep.subr.mxu0 0.0
  %375 = vmatpush1.msra.mxu0 0.0
  %376 = vmatprep.subr.mxu0 0.0
  %377 = vmatpush1.msra.mxu0 0.0
  %378 = vmatprep.subr.mxu0 %v66
  %379 = vmatpush1.msra.mxu0 %v65
  %380 = vmatprep.subr.mxu0 %v64
  %381 = vmatpush1.msra.mxu0 %v63
  %382 = vmatprep.subr.mxu0 %v62
  %383 = vmatpush1.msra.mxu0 %v61
  %384 = vmatprep.subr.mxu0 %v60
  %385 = vmatpush1.msra.mxu0 %v59
  %386 = vmatprep.subr.mxu0 0.0
  %387 = vmatpush2.msra.mxu0 0.0
  %388 = vmatprep.subr.mxu0 0.0
  %389 = vmatpush2.msra.mxu0 0.0
  %390 = vmatprep.subr.mxu0 0.0
  %391 = vmatpush2.msra.mxu0 0.0
  %392 = vmatprep.subr.mxu0 0.0
  %393 = vmatpush2.msra.mxu0 0.0
  %394 = vmatprep.subr.mxu0 0.0
  %395 = vmatpush2.msra.mxu0 0.0
  %396 = vmatprep.subr.mxu0 0.0
  %397 = vmatpush2.msra.mxu0 0.0
  %398 = vmatprep.subr.mxu0 0.0
  %399 = vmatpush2.msra.mxu0 0.0
  %400 = vmatprep.subr.mxu0 0.0
  %401 = vmatpush2.msra.mxu0 0.0
  %402 = vmatprep.subr.mxu0 0.0
  %403 = vmatpush2.msra.mxu0 0.0
  %404 = vmatprep.subr.mxu0 0.0
  %405 = vmatpush2.msra.mxu0 0.0
  %406 = vmatprep.subr.mxu0 0.0
  %407 = vmatpush2.msra.mxu0 0.0
  %408 = vmatprep.subr.mxu0 0.0
  %409 = vmatpush2.msra.mxu0 0.0
  %410 = vmatprep.subr.mxu0 0.0
  %411 = vmatpush2.msra.mxu0 0.0
  %412 = vmatprep.subr.mxu0 0.0
  %413 = vmatpush2.msra.mxu0 0.0
  %414 = vmatprep.subr.mxu0 0.0
  %415 = vmatpush2.msra.mxu0 0.0
  %416 = vmatprep.subr.mxu0 0.0
  %417 = vmatpush2.msra.mxu0 0.0
  %418 = vmatprep.mubr.f32.mxu0 0.0
  %419 = vmatmul.mubr.f32.gmra.mxu0 %v310
  %v420 = vpop.f32.mrf.mxu0
  %v421 = vadd.f32 %v215, %v420
  %v422 = vpop.f32.mrf.mxu0
  %v423 = vadd.f32 %v217, %v422
  %424 = vmatprep.mubr.f32.mxu0 0.0
  %425 = vmatmul.mubr.f32.gmra.mxu0 %v310
  %v426 = vpop.f32.mrf.mxu0
  %v427 = vadd.f32 %v221, %v426
  %v428 = vpop.f32.mrf.mxu0
  %v429 = vadd.f32 %v223, %v428
  %430 = vmatprep.mubr.f32.mxu0 0.0
  %431 = vmatmul.mubr.f32.gmra.mxu0 %v313
  %v432 = vpop.f32.mrf.mxu0
  %v433 = vadd.f32 %v227, %v432
  %v434 = vpop.f32.mrf.mxu0
  %v435 = vadd.f32 %v229, %v434
  %436 = vmatprep.mubr.f32.mxu0 0.0
  %437 = vmatmul.mubr.f32.gmra.mxu0 %v316
  %v438 = vpop.f32.mrf.mxu0
  %v439 = vadd.f32 %v233, %v438
  %v440 = vpop.f32.mrf.mxu0
  %v441 = vadd.f32 %v235, %v440
  %442 = vmatprep.mubr.f32.mxu0 0.0
  %443 = vmatmul.mubr.f32.gmra.mxu0 %v319
  %v444 = vpop.f32.mrf.mxu0
  %v445 = vadd.f32 %v239, %v444
  %v446 = vpop.f32.mrf.mxu0
  %v447 = vadd.f32 %v241, %v446
  %448 = vmatprep.mubr.f32.mxu0 0.0
  %449 = vmatmul.mubr.f32.gmra.mxu0 %v322
  %v450 = vpop.f32.mrf.mxu0
  %v451 = vadd.f32 %v245, %v450
  %v452 = vpop.f32.mrf.mxu0
  %v453 = vadd.f32 %v247, %v452
  %454 = vmatprep.mubr.f32.mxu0 0.0
  %455 = vmatmul.mubr.f32.gmra.mxu0 %v325
  %v456 = vpop.f32.mrf.mxu0
  %v457 = vadd.f32 %v251, %v456
  %v458 = vpop.f32.mrf.mxu0
  %v459 = vadd.f32 %v253, %v458
  %460 = vmatprep.mubr.f32.mxu0 0.0
  %461 = vmatmul.mubr.f32.gmra.mxu0 %v328
  %v462 = vpop.f32.mrf.mxu0
  %v463 = vadd.f32 %v257, %v462
  %v464 = vpop.f32.mrf.mxu0
  %v465 = vadd.f32 %v259, %v464
  %466 = vmatprep.mubr.f32.mxu0 0.0
  %467 = vmatmul.mubr.f32.gmra.mxu0 %v331
  %v468 = vpop.f32.mrf.mxu0
  %v469 = vadd.f32 %v263, %v468
  %v470 = vpop.f32.mrf.mxu0
  %v471 = vadd.f32 %v265, %v470
  %472 = vmatprep.mubr.f32.mxu0 0.0
  %473 = vmatmul.mubr.f32.gmra.mxu0 %v334
  %v474 = vpop.f32.mrf.mxu0
  %v475 = vadd.f32 %v269, %v474
  %v476 = vpop.f32.mrf.mxu0
  %v477 = vadd.f32 %v271, %v476
  %478 = vmatprep.mubr.f32.mxu0 0.0
  %479 = vmatmul.mubr.f32.gmra.mxu0 %v337
  %v480 = vpop.f32.mrf.mxu0
  %v481 = vadd.f32 %v275, %v480
  %v482 = vpop.f32.mrf.mxu0
  %v483 = vadd.f32 %v277, %v482
  %484 = vmatprep.mubr.f32.mxu0 0.0
  %485 = vmatmul.mubr.f32.gmra.mxu0 %v340
  %v486 = vpop.f32.mrf.mxu0
  %v487 = vadd.f32 %v281, %v486
  %v488 = vpop.f32.mrf.mxu0
  %v489 = vadd.f32 %v283, %v488
  %490 = vmatprep.mubr.f32.mxu0 0.0
  %491 = vmatmul.mubr.f32.gmra.mxu0 %v343
  %v492 = vpop.f32.mrf.mxu0
  %v493 = vadd.f32 %v287, %v492
  %v494 = vpop.f32.mrf.mxu0
  %v495 = vadd.f32 %v289, %v494
  %496 = vmatprep.mubr.f32.mxu0 0.0
  %497 = vmatmul.mubr.f32.gmra.mxu0 %v346
  %v498 = vpop.f32.mrf.mxu0
  %v499 = vadd.f32 %v293, %v498
  %v500 = vpop.f32.mrf.mxu0
  %v501 = vadd.f32 %v295, %v500
  %502 = vmatprep.mubr.f32.mxu0 0.0
  %503 = vmatmul.mubr.f32.gmra.mxu0 %v349
  %v504 = vpop.f32.mrf.mxu0
  %v505 = vadd.f32 %v299, %v504
  %v506 = vpop.f32.mrf.mxu0
  %v507 = vadd.f32 %v301, %v506
  %508 = vmatprep.mubr.f32.mxu0 0.0
  %509 = vmatmul.mubr.f32.gmra.mxu0 %v352
  %v510 = vpop.f32.mrf.mxu0
  %v511 = vadd.f32 %v305, %v510
  %v512 = vpop.f32.mrf.mxu0
  %v513 = vadd.f32 %v307, %v512
  %514 = vdwg.mxu0
  %s515 = scalar_lea.vmem %s0, 240
  %v516 = vld [vmem:[%s515] sm:$0xff]
  %v517 = vld [vmem:[%s515 + $0x8] sm:$0xff]
  %s518 = scalar_lea.vmem %s1, 128
  %v519 = vld [vmem:[%s518] sm:$0xff]
  %v520 = vld [vmem:[%s518 + $0x8] sm:$0xff]
  %v521 = vld [vmem:[%s518 + $0x10] sm:$0xff]
  %v522 = vld [vmem:[%s518 + $0x18] sm:$0xff]
  %v523 = vld [vmem:[%s518 + $0x20] sm:$0xff]
  %v524 = vld [vmem:[%s518 + $0x28] sm:$0xff]
  %v525 = vld [vmem:[%s518 + $0x30] sm:$0xff]
  %v526 = vld [vmem:[%s518 + $0x38] sm:$0xff]
  %v528 = vsel %vm99, %v516, 0
  %v531 = vsel %vm99, %v517, 0
  %533 = vmatprep.subr.mxu0 0.0
  %534 = vmatpush1.msra.mxu0 0.0
  %535 = vmatprep.subr.mxu0 0.0
  %536 = vmatpush1.msra.mxu0 0.0
  %537 = vmatprep.subr.mxu0 0.0
  %538 = vmatpush1.msra.mxu0 0.0
  %539 = vmatprep.subr.mxu0 0.0
  %540 = vmatpush1.msra.mxu0 0.0
  %541 = vmatprep.subr.mxu0 0.0
  %542 = vmatpush1.msra.mxu0 0.0
  %543 = vmatprep.subr.mxu0 0.0
  %544 = vmatpush1.msra.mxu0 0.0
  %545 = vmatprep.subr.mxu0 0.0
  %546 = vmatpush1.msra.mxu0 0.0
  %547 = vmatprep.subr.mxu0 0.0
  %548 = vmatpush1.msra.mxu0 0.0
  %549 = vmatprep.subr.mxu0 0.0
  %550 = vmatpush1.msra.mxu0 0.0
  %551 = vmatprep.subr.mxu0 0.0
  %552 = vmatpush1.msra.mxu0 0.0
  %553 = vmatprep.subr.mxu0 0.0
  %554 = vmatpush1.msra.mxu0 0.0
  %555 = vmatprep.subr.mxu0 0.0
  %556 = vmatpush1.msra.mxu0 0.0
  %557 = vmatprep.subr.mxu0 %v526
  %558 = vmatpush1.msra.mxu0 %v525
  %559 = vmatprep.subr.mxu0 %v524
  %560 = vmatpush1.msra.mxu0 %v523
  %561 = vmatprep.subr.mxu0 %v522
  %562 = vmatpush1.msra.mxu0 %v521
  %563 = vmatprep.subr.mxu0 %v520
  %564 = vmatpush1.msra.mxu0 %v519
  %565 = vmatprep.subr.mxu0 0.0
  %566 = vmatpush2.msra.mxu0 0.0
  %567 = vmatprep.subr.mxu0 0.0
  %568 = vmatpush2.msra.mxu0 0.0
  %569 = vmatprep.subr.mxu0 0.0
  %570 = vmatpush2.msra.mxu0 0.0
  %571 = vmatprep.subr.mxu0 0.0
  %572 = vmatpush2.msra.mxu0 0.0
  %573 = vmatprep.subr.mxu0 0.0
  %574 = vmatpush2.msra.mxu0 0.0
  %575 = vmatprep.subr.mxu0 0.0
  %576 = vmatpush2.msra.mxu0 0.0
  %577 = vmatprep.subr.mxu0 0.0
  %578 = vmatpush2.msra.mxu0 0.0
  %579 = vmatprep.subr.mxu0 0.0
  %580 = vmatpush2.msra.mxu0 0.0
  %581 = vmatprep.subr.mxu0 0.0
  %582 = vmatpush2.msra.mxu0 0.0
  %583 = vmatprep.subr.mxu0 0.0
  %584 = vmatpush2.msra.mxu0 0.0
  %585 = vmatprep.subr.mxu0 0.0
  %586 = vmatpush2.msra.mxu0 0.0
  %587 = vmatprep.subr.mxu0 0.0
  %588 = vmatpush2.msra.mxu0 0.0
  %589 = vmatprep.subr.mxu0 0.0
  %590 = vmatpush2.msra.mxu0 0.0
  %591 = vmatprep.subr.mxu0 0.0
  %592 = vmatpush2.msra.mxu0 0.0
  %593 = vmatprep.subr.mxu0 0.0
  %594 = vmatpush2.msra.mxu0 0.0
  %595 = vmatprep.subr.mxu0 0.0
  %596 = vmatpush2.msra.mxu0 0.0
  %597 = vmatprep.mubr.f32.mxu0 0.0
  %598 = vmatmul.mubr.f32.gmra.mxu0 %v313
  %v599 = vpop.f32.mrf.mxu0
  %v600 = vadd.f32 0.0, %v599
  %v601 = vpop.f32.mrf.mxu0
  %v602 = vadd.f32 0.0, %v601
  %603 = vmatprep.mubr.f32.mxu0 0.0
  %604 = vmatmul.mubr.f32.gmra.mxu0 %v316
  %v605 = vpop.f32.mrf.mxu0
  %v606 = vadd.f32 0.0, %v605
  %v607 = vpop.f32.mrf.mxu0
  %v608 = vadd.f32 0.0, %v607
  %609 = vmatprep.mubr.f32.mxu0 0.0
  %610 = vmatmul.mubr.f32.gmra.mxu0 %v319
  %v611 = vpop.f32.mrf.mxu0
  %v612 = vadd.f32 0.0, %v611
  %v613 = vpop.f32.mrf.mxu0
  %v614 = vadd.f32 0.0, %v613
  %615 = vmatprep.mubr.f32.mxu0 0.0
  %616 = vmatmul.mubr.f32.gmra.mxu0 %v322
  %v617 = vpop.f32.mrf.mxu0
  %v618 = vadd.f32 0.0, %v617
  %v619 = vpop.f32.mrf.mxu0
  %v620 = vadd.f32 0.0, %v619
  %621 = vmatprep.mubr.f32.mxu0 0.0
  %622 = vmatmul.mubr.f32.gmra.mxu0 %v325
  %v623 = vpop.f32.mrf.mxu0
  %v624 = vadd.f32 0.0, %v623
  %v625 = vpop.f32.mrf.mxu0
  %v626 = vadd.f32 0.0, %v625
  %627 = vmatprep.mubr.f32.mxu0 0.0
  %628 = vmatmul.mubr.f32.gmra.mxu0 %v328
  %v629 = vpop.f32.mrf.mxu0
  %v630 = vadd.f32 0.0, %v629
  %v631 = vpop.f32.mrf.mxu0
  %v632 = vadd.f32 0.0, %v631
  %633 = vmatprep.mubr.f32.mxu0 0.0
  %634 = vmatmul.mubr.f32.gmra.mxu0 %v331
  %v635 = vpop.f32.mrf.mxu0
  %v636 = vadd.f32 0.0, %v635
  %v637 = vpop.f32.mrf.mxu0
  %v638 = vadd.f32 0.0, %v637
  %639 = vmatprep.mubr.f32.mxu0 0.0
  %640 = vmatmul.mubr.f32.gmra.mxu0 %v334
  %v641 = vpop.f32.mrf.mxu0
  %v642 = vadd.f32 0.0, %v641
  %v643 = vpop.f32.mrf.mxu0
  %v644 = vadd.f32 0.0, %v643
  %645 = vmatprep.mubr.f32.mxu0 0.0
  %646 = vmatmul.mubr.f32.gmra.mxu0 %v337
  %v647 = vpop.f32.mrf.mxu0
  %v648 = vadd.f32 0.0, %v647
  %v649 = vpop.f32.mrf.mxu0
  %v650 = vadd.f32 0.0, %v649
  %651 = vmatprep.mubr.f32.mxu0 0.0
  %652 = vmatmul.mubr.f32.gmra.mxu0 %v340
  %v653 = vpop.f32.mrf.mxu0
  %v654 = vadd.f32 0.0, %v653
  %v655 = vpop.f32.mrf.mxu0
  %v656 = vadd.f32 0.0, %v655
  %657 = vmatprep.mubr.f32.mxu0 0.0
  %658 = vmatmul.mubr.f32.gmra.mxu0 %v343
  %v659 = vpop.f32.mrf.mxu0
  %v660 = vadd.f32 0.0, %v659
  %v661 = vpop.f32.mrf.mxu0
  %v662 = vadd.f32 0.0, %v661
  %663 = vmatprep.mubr.f32.mxu0 0.0
  %664 = vmatmul.mubr.f32.gmra.mxu0 %v346
  %v665 = vpop.f32.mrf.mxu0
  %v666 = vadd.f32 0.0, %v665
  %v667 = vpop.f32.mrf.mxu0
  %v668 = vadd.f32 0.0, %v667
  %669 = vmatprep.mubr.f32.mxu0 0.0
  %670 = vmatmul.mubr.f32.gmra.mxu0 %v349
  %v671 = vpop.f32.mrf.mxu0
  %v672 = vadd.f32 0.0, %v671
  %v673 = vpop.f32.mrf.mxu0
  %v674 = vadd.f32 0.0, %v673
  %675 = vmatprep.mubr.f32.mxu0 0.0
  %676 = vmatmul.mubr.f32.gmra.mxu0 %v352
  %v677 = vpop.f32.mrf.mxu0
  %v678 = vadd.f32 0.0, %v677
  %v679 = vpop.f32.mrf.mxu0
  %v680 = vadd.f32 0.0, %v679
  %681 = vmatprep.mubr.f32.mxu0 0.0
  %682 = vmatmul.mubr.f32.gmra.mxu0 %v528
  %v683 = vpop.f32.mrf.mxu0
  %v684 = vadd.f32 0.0, %v683
  %v685 = vpop.f32.mrf.mxu0
  %v686 = vadd.f32 0.0, %v685
  %687 = vmatprep.mubr.f32.mxu0 0.0
  %688 = vmatmul.mubr.f32.gmra.mxu0 %v531
  %v689 = vpop.f32.mrf.mxu0
  %v690 = vadd.f32 0.0, %v689
  %v691 = vpop.f32.mrf.mxu0
  %v692 = vadd.f32 0.0, %v691
  %693 = vdwg.mxu0
  %v694 = vadd.f32 %v421, %v600
  %v695 = vadd.f32 %v423, %v602
  %v696 = vadd.f32 %v427, %v606
  %v697 = vadd.f32 %v429, %v608
  %v698 = vadd.f32 %v433, %v612
  %v699 = vadd.f32 %v435, %v614
  %v700 = vadd.f32 %v439, %v618
  %v701 = vadd.f32 %v441, %v620
  %v702 = vadd.f32 %v445, %v624
  %v703 = vadd.f32 %v447, %v626
  %v704 = vadd.f32 %v451, %v630
  %v705 = vadd.f32 %v453, %v632
  %v706 = vadd.f32 %v457, %v636
  %v707 = vadd.f32 %v459, %v638
  %v708 = vadd.f32 %v463, %v642
  %v709 = vadd.f32 %v465, %v644
  %v710 = vadd.f32 %v469, %v648
  %v711 = vadd.f32 %v471, %v650
  %v712 = vadd.f32 %v475, %v654
  %v713 = vadd.f32 %v477, %v656
  %v714 = vadd.f32 %v481, %v660
  %v715 = vadd.f32 %v483, %v662
  %v716 = vadd.f32 %v487, %v666
  %v717 = vadd.f32 %v489, %v668
  %v718 = vadd.f32 %v493, %v672
  %v719 = vadd.f32 %v495, %v674
  %v720 = vadd.f32 %v499, %v678
  %v721 = vadd.f32 %v501, %v680
  %v722 = vadd.f32 %v505, %v684
  %v723 = vadd.f32 %v507, %v686
  %v724 = vadd.f32 %v511, %v690
  %v725 = vadd.f32 %v513, %v692
  %v726 = vld [vmem:[%s2] sm:$0x3]
  %v728 = vlaneseq
  %v729 = vshrl.u32 %v728, 7
  %v730 = vsub.s32 0, %v729
  %v731 = vrot.slane %v726, %v730
  %v732 = vlaneseq
  %v733 = vshrl.u32 %v732, 7
  %v734 = vsub.s32 1, %v733
  %v735 = vrot.slane %v726, %v734
  %v738 = vadd.f32 %v694, %v731
  %v739 = vadd.f32 %v695, %v735
  %v740 = vadd.f32 %v696, %v731
  %v741 = vadd.f32 %v697, %v735
  %v742 = vadd.f32 %v698, %v731
  %v743 = vadd.f32 %v699, %v735
  %v744 = vadd.f32 %v700, %v731
  %v745 = vadd.f32 %v701, %v735
  %v746 = vadd.f32 %v702, %v731
  %v747 = vadd.f32 %v703, %v735
  %v748 = vadd.f32 %v704, %v731
  %v749 = vadd.f32 %v705, %v735
  %v750 = vadd.f32 %v706, %v731
  %v751 = vadd.f32 %v707, %v735
  %v752 = vadd.f32 %v708, %v731
  %v753 = vadd.f32 %v709, %v735
  %v754 = vadd.f32 %v710, %v731
  %v755 = vadd.f32 %v711, %v735
  %v756 = vadd.f32 %v712, %v731
  %v757 = vadd.f32 %v713, %v735
  %v758 = vadd.f32 %v714, %v731
  %v759 = vadd.f32 %v715, %v735
  %v760 = vadd.f32 %v716, %v731
  %v761 = vadd.f32 %v717, %v735
  %v762 = vadd.f32 %v718, %v731
  %v763 = vadd.f32 %v719, %v735
  %v764 = vadd.f32 %v720, %v731
  %v765 = vadd.f32 %v721, %v735
  %v766 = vadd.f32 %v722, %v731
  %v767 = vadd.f32 %v723, %v735
  %v768 = vadd.f32 %v724, %v731
  %v769 = vadd.f32 %v725, %v735
  %v770 = vmax.f32 %v738, 0.0
  %v771 = vmax.f32 %v739, 0.0
  %v772 = vmax.f32 %v740, 0.0
  %v773 = vmax.f32 %v741, 0.0
  %v774 = vmax.f32 %v742, 0.0
  %v775 = vmax.f32 %v743, 0.0
  %v776 = vmax.f32 %v744, 0.0
  %v777 = vmax.f32 %v745, 0.0
  %v778 = vmax.f32 %v746, 0.0
  %v779 = vmax.f32 %v747, 0.0
  %v780 = vmax.f32 %v748, 0.0
  %v781 = vmax.f32 %v749, 0.0
  %v782 = vmax.f32 %v750, 0.0
  %v783 = vmax.f32 %v751, 0.0
  %v784 = vmax.f32 %v752, 0.0
  %v785 = vmax.f32 %v753, 0.0
  %v786 = vmax.f32 %v754, 0.0
  %v787 = vmax.f32 %v755, 0.0
  %v788 = vmax.f32 %v756, 0.0
  %v789 = vmax.f32 %v757, 0.0
  %v790 = vmax.f32 %v758, 0.0
  %v791 = vmax.f32 %v759, 0.0
  %v792 = vmax.f32 %v760, 0.0
  %v793 = vmax.f32 %v761, 0.0
  %v794 = vmax.f32 %v762, 0.0
  %v795 = vmax.f32 %v763, 0.0
  %v796 = vmax.f32 %v764, 0.0
  %v797 = vmax.f32 %v765, 0.0
  %v798 = vmax.f32 %v766, 0.0
  %v799 = vmax.f32 %v767, 0.0
  %v800 = vmax.f32 %v768, 0.0
  %v801 = vmax.f32 %v769, 0.0
  %v802 = vld [vmem:[%s3] sm:$0xff]
  %v803 = vld [vmem:[%s3 + $0x8] sm:$0xff]
  %v804 = vld [vmem:[%s3 + $0x10] sm:$0xff]
  %v805 = vld [vmem:[%s3 + $0x18] sm:$0xff]
  %v806 = vld [vmem:[%s3 + $0x20] sm:$0xff]
  %v807 = vld [vmem:[%s3 + $0x28] sm:$0xff]
  %v808 = vld [vmem:[%s3 + $0x30] sm:$0xff]
  %v809 = vld [vmem:[%s3 + $0x38] sm:$0xff]
  %v810 = vld [vmem:[%s3 + $0x40] sm:$0xff]
  %v811 = vld [vmem:[%s3 + $0x48] sm:$0xff]
  %v812 = vld [vmem:[%s3 + $0x50] sm:$0xff]
  %v813 = vld [vmem:[%s3 + $0x58] sm:$0xff]
  %v814 = vld [vmem:[%s3 + $0x60] sm:$0xff]
  %v815 = vld [vmem:[%s3 + $0x68] sm:$0xff]
  %v816 = vld [vmem:[%s3 + $0x70] sm:$0xff]
  %v817 = vld [vmem:[%s3 + $0x78] sm:$0xff]
  %v818 = vld [vmem:[%s3 + $0x80] sm:$0xff]
  %v819 = vld [vmem:[%s3 + $0x88] sm:$0xff]
  %v820 = vld [vmem:[%s3 + $0x90] sm:$0xff]
  %v821 = vld [vmem:[%s3 + $0x98] sm:$0xff]
  %v822 = vld [vmem:[%s3 + $0xa0] sm:$0xff]
  %v823 = vld [vmem:[%s3 + $0xa8] sm:$0xff]
  %v824 = vld [vmem:[%s3 + $0xb0] sm:$0xff]
  %v825 = vld [vmem:[%s3 + $0xb8] sm:$0xff]
  %v826 = vld [vmem:[%s3 + $0xc0] sm:$0xff]
  %v827 = vld [vmem:[%s3 + $0xc8] sm:$0xff]
  %v828 = vld [vmem:[%s3 + $0xd0] sm:$0xff]
  %v829 = vld [vmem:[%s3 + $0xd8] sm:$0xff]
  %v830 = vld [vmem:[%s3 + $0xe0] sm:$0xff]
  %v831 = vld [vmem:[%s3 + $0xe8] sm:$0xff]
  %v832 = vld [vmem:[%s3 + $0xf0] sm:$0xff]
  %v833 = vld [vmem:[%s3 + $0xf8] sm:$0xff]
  %v834 = vld [vmem:[%s3 + $0x100] sm:$0xff]
  %v835 = vld [vmem:[%s3 + $0x108] sm:$0xff]
  %v836 = vld [vmem:[%s3 + $0x110] sm:$0xff]
  %v837 = vld [vmem:[%s3 + $0x118] sm:$0xff]
  %v838 = vld [vmem:[%s3 + $0x120] sm:$0xff]
  %v839 = vld [vmem:[%s3 + $0x128] sm:$0xff]
  %v840 = vld [vmem:[%s3 + $0x130] sm:$0xff]
  %v841 = vld [vmem:[%s3 + $0x138] sm:$0xff]
  %v842 = vld [vmem:[%s3 + $0x140] sm:$0xff]
  %v843 = vld [vmem:[%s3 + $0x148] sm:$0xff]
  %v844 = vld [vmem:[%s3 + $0x150] sm:$0xff]
  %v845 = vld [vmem:[%s3 + $0x158] sm:$0xff]
  %v846 = vld [vmem:[%s3 + $0x160] sm:$0xff]
  %v847 = vld [vmem:[%s3 + $0x168] sm:$0xff]
  %v848 = vld [vmem:[%s3 + $0x170] sm:$0xff]
  %v849 = vld [vmem:[%s3 + $0x178] sm:$0xff]
  %v850 = vld [vmem:[%s3 + $0x180] sm:$0xff]
  %v851 = vld [vmem:[%s3 + $0x188] sm:$0xff]
  %v852 = vld [vmem:[%s3 + $0x190] sm:$0xff]
  %v853 = vld [vmem:[%s3 + $0x198] sm:$0xff]
  %v854 = vld [vmem:[%s3 + $0x1a0] sm:$0xff]
  %v855 = vld [vmem:[%s3 + $0x1a8] sm:$0xff]
  %v856 = vld [vmem:[%s3 + $0x1b0] sm:$0xff]
  %v857 = vld [vmem:[%s3 + $0x1b8] sm:$0xff]
  %v858 = vld [vmem:[%s3 + $0x1c0] sm:$0xff]
  %v859 = vld [vmem:[%s3 + $0x1c8] sm:$0xff]
  %v860 = vld [vmem:[%s3 + $0x1d0] sm:$0xff]
  %v861 = vld [vmem:[%s3 + $0x1d8] sm:$0xff]
  %v862 = vld [vmem:[%s3 + $0x1e0] sm:$0xff]
  %v863 = vld [vmem:[%s3 + $0x1e8] sm:$0xff]
  %v864 = vld [vmem:[%s3 + $0x1f0] sm:$0xff]
  %v865 = vld [vmem:[%s3 + $0x1f8] sm:$0xff]
  %s866 = scalar_lea.vmem %s3, 512
  %v867 = vld [vmem:[%s866] sm:$0xff]
  %v868 = vld [vmem:[%s866 + $0x8] sm:$0xff]
  %v869 = vld [vmem:[%s866 + $0x10] sm:$0xff]
  %v870 = vld [vmem:[%s866 + $0x18] sm:$0xff]
  %v871 = vld [vmem:[%s866 + $0x20] sm:$0xff]
  %v872 = vld [vmem:[%s866 + $0x28] sm:$0xff]
  %v873 = vld [vmem:[%s866 + $0x30] sm:$0xff]
  %v874 = vld [vmem:[%s866 + $0x38] sm:$0xff]
  %v875 = vld [vmem:[%s866 + $0x40] sm:$0xff]
  %v876 = vld [vmem:[%s866 + $0x48] sm:$0xff]
  %v877 = vld [vmem:[%s866 + $0x50] sm:$0xff]
  %v878 = vld [vmem:[%s866 + $0x58] sm:$0xff]
  %v879 = vld [vmem:[%s866 + $0x60] sm:$0xff]
  %v880 = vld [vmem:[%s866 + $0x68] sm:$0xff]
  %v881 = vld [vmem:[%s866 + $0x70] sm:$0xff]
  %v882 = vld [vmem:[%s866 + $0x78] sm:$0xff]
  %v883 = vld [vmem:[%s866 + $0x80] sm:$0xff]
  %v884 = vld [vmem:[%s866 + $0x88] sm:$0xff]
  %v885 = vld [vmem:[%s866 + $0x90] sm:$0xff]
  %v886 = vld [vmem:[%s866 + $0x98] sm:$0xff]
  %v887 = vld [vmem:[%s866 + $0xa0] sm:$0xff]
  %v888 = vld [vmem:[%s866 + $0xa8] sm:$0xff]
  %v889 = vld [vmem:[%s866 + $0xb0] sm:$0xff]
  %v890 = vld [vmem:[%s866 + $0xb8] sm:$0xff]
  %v891 = vld [vmem:[%s866 + $0xc0] sm:$0xff]
  %v892 = vld [vmem:[%s866 + $0xc8] sm:$0xff]
  %v893 = vld [vmem:[%s866 + $0xd0] sm:$0xff]
  %v894 = vld [vmem:[%s866 + $0xd8] sm:$0xff]
  %v895 = vld [vmem:[%s866 + $0xe0] sm:$0xff]
  %v896 = vld [vmem:[%s866 + $0xe8] sm:$0xff]
  %v897 = vld [vmem:[%s866 + $0xf0] sm:$0xff]
  %v898 = vld [vmem:[%s866 + $0xf8] sm:$0xff]
  %v899 = vld [vmem:[%s866 + $0x100] sm:$0xff]
  %v900 = vld [vmem:[%s866 + $0x108] sm:$0xff]
  %v901 = vld [vmem:[%s866 + $0x110] sm:$0xff]
  %v902 = vld [vmem:[%s866 + $0x118] sm:$0xff]
  %v903 = vld [vmem:[%s866 + $0x120] sm:$0xff]
  %v904 = vld [vmem:[%s866 + $0x128] sm:$0xff]
  %v905 = vld [vmem:[%s866 + $0x130] sm:$0xff]
  %v906 = vld [vmem:[%s866 + $0x138] sm:$0xff]
  %v907 = vld [vmem:[%s866 + $0x140] sm:$0xff]
  %v908 = vld [vmem:[%s866 + $0x148] sm:$0xff]
  %v909 = vld [vmem:[%s866 + $0x150] sm:$0xff]
  %v910 = vld [vmem:[%s866 + $0x158] sm:$0xff]
  %v911 = vld [vmem:[%s866 + $0x160] sm:$0xff]
  %v912 = vld [vmem:[%s866 + $0x168] sm:$0xff]
  %v913 = vld [vmem:[%s866 + $0x170] sm:$0xff]
  %v914 = vld [vmem:[%s866 + $0x178] sm:$0xff]
  %v915 = vld [vmem:[%s866 + $0x180] sm:$0xff]
  %v916 = vld [vmem:[%s866 + $0x188] sm:$0xff]
  %v917 = vld [vmem:[%s866 + $0x190] sm:$0xff]
  %v918 = vld [vmem:[%s866 + $0x198] sm:$0xff]
  %v919 = vld [vmem:[%s866 + $0x1a0] sm:$0xff]
  %v920 = vld [vmem:[%s866 + $0x1a8] sm:$0xff]
  %v921 = vld [vmem:[%s866 + $0x1b0] sm:$0xff]
  %v922 = vld [vmem:[%s866 + $0x1b8] sm:$0xff]
  %v923 = vld [vmem:[%s866 + $0x1c0] sm:$0xff]
  %v924 = vld [vmem:[%s866 + $0x1c8] sm:$0xff]
  %v925 = vld [vmem:[%s866 + $0x1d0] sm:$0xff]
  %v926 = vld [vmem:[%s866 + $0x1d8] sm:$0xff]
  %v927 = vld [vmem:[%s866 + $0x1e0] sm:$0xff]
  %v928 = vld [vmem:[%s866 + $0x1e8] sm:$0xff]
  %v929 = vld [vmem:[%s866 + $0x1f0] sm:$0xff]
  %v930 = vld [vmem:[%s866 + $0x1f8] sm:$0xff]
  %931 = vmatprep.subr.mxu0 %v898
  %932 = vmatpush1.msra.mxu0 %v897
  %933 = vmatprep.subr.mxu0 %v896
  %934 = vmatpush1.msra.mxu0 %v895
  %935 = vmatprep.subr.mxu0 %v894
  %936 = vmatpush1.msra.mxu0 %v893
  %937 = vmatprep.subr.mxu0 %v892
  %938 = vmatpush1.msra.mxu0 %v891
  %939 = vmatprep.subr.mxu0 %v890
  %940 = vmatpush1.msra.mxu0 %v889
  %941 = vmatprep.subr.mxu0 %v888
  %942 = vmatpush1.msra.mxu0 %v887
  %943 = vmatprep.subr.mxu0 %v886
  %944 = vmatpush1.msra.mxu0 %v885
  %945 = vmatprep.subr.mxu0 %v884
  %946 = vmatpush1.msra.mxu0 %v883
  %947 = vmatprep.subr.mxu0 %v882
  %948 = vmatpush1.msra.mxu0 %v881
  %949 = vmatprep.subr.mxu0 %v880
  %950 = vmatpush1.msra.mxu0 %v879
  %951 = vmatprep.subr.mxu0 %v878
  %952 = vmatpush1.msra.mxu0 %v877
  %953 = vmatprep.subr.mxu0 %v876
  %954 = vmatpush1.msra.mxu0 %v875
  %955 = vmatprep.subr.mxu0 %v874
  %956 = vmatpush1.msra.mxu0 %v873
  %957 = vmatprep.subr.mxu0 %v872
  %958 = vmatpush1.msra.mxu0 %v871
  %959 = vmatprep.subr.mxu0 %v870
  %960 = vmatpush1.msra.mxu0 %v869
  %961 = vmatprep.subr.mxu0 %v868
  %962 = vmatpush1.msra.mxu0 %v867
  %963 = vmatprep.subr.mxu0 %v930
  %964 = vmatpush2.msra.mxu0 %v929
  %965 = vmatprep.subr.mxu0 %v928
  %966 = vmatpush2.msra.mxu0 %v927
  %967 = vmatprep.subr.mxu0 %v926
  %968 = vmatpush2.msra.mxu0 %v925
  %969 = vmatprep.subr.mxu0 %v924
  %970 = vmatpush2.msra.mxu0 %v923
  %971 = vmatprep.subr.mxu0 %v922
  %972 = vmatpush2.msra.mxu0 %v921
  %973 = vmatprep.subr.mxu0 %v920
  %974 = vmatpush2.msra.mxu0 %v919
  %975 = vmatprep.subr.mxu0 %v918
  %976 = vmatpush2.msra.mxu0 %v917
  %977 = vmatprep.subr.mxu0 %v916
  %978 = vmatpush2.msra.mxu0 %v915
  %979 = vmatprep.subr.mxu0 %v914
  %980 = vmatpush2.msra.mxu0 %v913
  %981 = vmatprep.subr.mxu0 %v912
  %982 = vmatpush2.msra.mxu0 %v911
  %983 = vmatprep.subr.mxu0 %v910
  %984 = vmatpush2.msra.mxu0 %v909
  %985 = vmatprep.subr.mxu0 %v908
  %986 = vmatpush2.msra.mxu0 %v907
  %987 = vmatprep.subr.mxu0 %v906
  %988 = vmatpush2.msra.mxu0 %v905
  %989 = vmatprep.subr.mxu0 %v904
  %990 = vmatpush2.msra.mxu0 %v903
  %991 = vmatprep.subr.mxu0 %v902
  %992 = vmatpush2.msra.mxu0 %v901
  %993 = vmatprep.subr.mxu0 %v900
  %994 = vmatpush2.msra.mxu0 %v899
  %995 = vmatprep.mubr.f32.mxu0 %v771
  %996 = vmatmul.mubr.f32.gmra.mxu0 %v770
  %v997 = vpop.f32.mrf.mxu0
  %v998 = vadd.f32 0.0, %v997
  %v999 = vpop.f32.mrf.mxu0
  %v1000 = vadd.f32 0.0, %v999
  %1001 = vmatprep.mubr.f32.mxu0 %v773
  %1002 = vmatmul.mubr.f32.gmra.mxu0 %v772
  %v1003 = vpop.f32.mrf.mxu0
  %v1004 = vadd.f32 0.0, %v1003
  %v1005 = vpop.f32.mrf.mxu0
  %v1006 = vadd.f32 0.0, %v1005
  %1007 = vmatprep.mubr.f32.mxu0 %v779
  %1008 = vmatmul.mubr.f32.gmra.mxu0 %v778
  %v1009 = vpop.f32.mrf.mxu0
  %v1010 = vadd.f32 0.0, %v1009
  %v1011 = vpop.f32.mrf.mxu0
  %v1012 = vadd.f32 0.0, %v1011
  %1013 = vmatprep.mubr.f32.mxu0 %v781
  %1014 = vmatmul.mubr.f32.gmra.mxu0 %v780
  %v1015 = vpop.f32.mrf.mxu0
  %v1016 = vadd.f32 0.0, %v1015
  %v1017 = vpop.f32.mrf.mxu0
  %v1018 = vadd.f32 0.0, %v1017
  %1019 = vmatprep.mubr.f32.mxu0 %v787
  %1020 = vmatmul.mubr.f32.gmra.mxu0 %v786
  %v1021 = vpop.f32.mrf.mxu0
  %v1022 = vadd.f32 0.0, %v1021
  %v1023 = vpop.f32.mrf.mxu0
  %v1024 = vadd.f32 0.0, %v1023
  %1025 = vmatprep.mubr.f32.mxu0 %v789
  %1026 = vmatmul.mubr.f32.gmra.mxu0 %v788
  %v1027 = vpop.f32.mrf.mxu0
  %v1028 = vadd.f32 0.0, %v1027
  %v1029 = vpop.f32.mrf.mxu0
  %v1030 = vadd.f32 0.0, %v1029
  %1031 = vmatprep.mubr.f32.mxu0 %v795
  %1032 = vmatmul.mubr.f32.gmra.mxu0 %v794
  %v1033 = vpop.f32.mrf.mxu0
  %v1034 = vadd.f32 0.0, %v1033
  %v1035 = vpop.f32.mrf.mxu0
  %v1036 = vadd.f32 0.0, %v1035
  %1037 = vmatprep.mubr.f32.mxu0 %v797
  %1038 = vmatmul.mubr.f32.gmra.mxu0 %v796
  %v1039 = vpop.f32.mrf.mxu0
  %v1040 = vadd.f32 0.0, %v1039
  %v1041 = vpop.f32.mrf.mxu0
  %v1042 = vadd.f32 0.0, %v1041
  %1043 = vdwg.mxu0
  %1044 = vmatprep.subr.mxu0 %v833
  %1045 = vmatpush1.msra.mxu0 %v832
  %1046 = vmatprep.subr.mxu0 %v831
  %1047 = vmatpush1.msra.mxu0 %v830
  %1048 = vmatprep.subr.mxu0 %v829
  %1049 = vmatpush1.msra.mxu0 %v828
  %1050 = vmatprep.subr.mxu0 %v827
  %1051 = vmatpush1.msra.mxu0 %v826
  %1052 = vmatprep.subr.mxu0 %v825
  %1053 = vmatpush1.msra.mxu0 %v824
  %1054 = vmatprep.subr.mxu0 %v823
  %1055 = vmatpush1.msra.mxu0 %v822
  %1056 = vmatprep.subr.mxu0 %v821
  %1057 = vmatpush1.msra.mxu0 %v820
  %1058 = vmatprep.subr.mxu0 %v819
  %1059 = vmatpush1.msra.mxu0 %v818
  %1060 = vmatprep.subr.mxu0 %v817
  %1061 = vmatpush1.msra.mxu0 %v816
  %1062 = vmatprep.subr.mxu0 %v815
  %1063 = vmatpush1.msra.mxu0 %v814
  %1064 = vmatprep.subr.mxu0 %v813
  %1065 = vmatpush1.msra.mxu0 %v812
  %1066 = vmatprep.subr.mxu0 %v811
  %1067 = vmatpush1.msra.mxu0 %v810
  %1068 = vmatprep.subr.mxu0 %v809
  %1069 = vmatpush1.msra.mxu0 %v808
  %1070 = vmatprep.subr.mxu0 %v807
  %1071 = vmatpush1.msra.mxu0 %v806
  %1072 = vmatprep.subr.mxu0 %v805
  %1073 = vmatpush1.msra.mxu0 %v804
  %1074 = vmatprep.subr.mxu0 %v803
  %1075 = vmatpush1.msra.mxu0 %v802
  %1076 = vmatprep.subr.mxu0 %v865
  %1077 = vmatpush2.msra.mxu0 %v864
  %1078 = vmatprep.subr.mxu0 %v863
  %1079 = vmatpush2.msra.mxu0 %v862
  %1080 = vmatprep.subr.mxu0 %v861
  %1081 = vmatpush2.msra.mxu0 %v860
  %1082 = vmatprep.subr.mxu0 %v859
  %1083 = vmatpush2.msra.mxu0 %v858
  %1084 = vmatprep.subr.mxu0 %v857
  %1085 = vmatpush2.msra.mxu0 %v856
  %1086 = vmatprep.subr.mxu0 %v855
  %1087 = vmatpush2.msra.mxu0 %v854
  %1088 = vmatprep.subr.mxu0 %v853
  %1089 = vmatpush2.msra.mxu0 %v852
  %1090 = vmatprep.subr.mxu0 %v851
  %1091 = vmatpush2.msra.mxu0 %v850
  %1092 = vmatprep.subr.mxu0 %v849
  %1093 = vmatpush2.msra.mxu0 %v848
  %1094 = vmatprep.subr.mxu0 %v847
  %1095 = vmatpush2.msra.mxu0 %v846
  %1096 = vmatprep.subr.mxu0 %v845
  %1097 = vmatpush2.msra.mxu0 %v844
  %1098 = vmatprep.subr.mxu0 %v843
  %1099 = vmatpush2.msra.mxu0 %v842
  %1100 = vmatprep.subr.mxu0 %v841
  %1101 = vmatpush2.msra.mxu0 %v840
  %1102 = vmatprep.subr.mxu0 %v839
  %1103 = vmatpush2.msra.mxu0 %v838
  %1104 = vmatprep.subr.mxu0 %v837
  %1105 = vmatpush2.msra.mxu0 %v836
  %1106 = vmatprep.subr.mxu0 %v835
  %1107 = vmatpush2.msra.mxu0 %v834
  %1108 = vmatprep.mubr.f32.mxu0 0.0
  %1109 = vmatmul.mubr.f32.gmra.mxu0 0.0
  %v1110 = vpop.f32.mrf.mxu0
  %v1111 = vadd.f32 %v998, %v1110
  %v1112 = vpop.f32.mrf.mxu0
  %v1113 = vadd.f32 %v1000, %v1112
  %1114 = vmatprep.mubr.f32.mxu0 0.0
  %1115 = vmatmul.mubr.f32.gmra.mxu0 0.0
  %v1116 = vpop.f32.mrf.mxu0
  %v1117 = vadd.f32 %v1004, %v1116
  %v1118 = vpop.f32.mrf.mxu0
  %v1119 = vadd.f32 %v1006, %v1118
  %1120 = vmatprep.mubr.f32.mxu0 %v775
  %1121 = vmatmul.mubr.f32.gmra.mxu0 %v774
  %v1122 = vpop.f32.mrf.mxu0
  %v1123 = vadd.f32 %v1010, %v1122
  %v1124 = vpop.f32.mrf.mxu0
  %v1125 = vadd.f32 %v1012, %v1124
  %1126 = vmatprep.mubr.f32.mxu0 %v777
  %1127 = vmatmul.mubr.f32.gmra.mxu0 %v776
  %v1128 = vpop.f32.mrf.mxu0
  %v1129 = vadd.f32 %v1016, %v1128
  %v1130 = vpop.f32.mrf.mxu0
  %v1131 = vadd.f32 %v1018, %v1130
  %1132 = vmatprep.mubr.f32.mxu0 %v783
  %1133 = vmatmul.mubr.f32.gmra.mxu0 %v782
  %v1134 = vpop.f32.mrf.mxu0
  %v1135 = vadd.f32 %v1022, %v1134
  %v1136 = vpop.f32.mrf.mxu0
  %v1137 = vadd.f32 %v1024, %v1136
  %1138 = vmatprep.mubr.f32.mxu0 %v785
  %1139 = vmatmul.mubr.f32.gmra.mxu0 %v784
  %v1140 = vpop.f32.mrf.mxu0
  %v1141 = vadd.f32 %v1028, %v1140
  %v1142 = vpop.f32.mrf.mxu0
  %v1143 = vadd.f32 %v1030, %v1142
  %1144 = vmatprep.mubr.f32.mxu0 %v791
  %1145 = vmatmul.mubr.f32.gmra.mxu0 %v790
  %v1146 = vpop.f32.mrf.mxu0
  %v1147 = vadd.f32 %v1034, %v1146
  %v1148 = vpop.f32.mrf.mxu0
  %v1149 = vadd.f32 %v1036, %v1148
  %1150 = vmatprep.mubr.f32.mxu0 %v793
  %1151 = vmatmul.mubr.f32.gmra.mxu0 %v792
  %v1152 = vpop.f32.mrf.mxu0
  %v1153 = vadd.f32 %v1040, %v1152
  %v1154 = vpop.f32.mrf.mxu0
  %v1155 = vadd.f32 %v1042, %v1154
  %1156 = vdwg.mxu0
  %s1157 = scalar_lea.vmem %s3, 1024
  %v1158 = vld [vmem:[%s1157] sm:$0xff]
  %v1159 = vld [vmem:[%s1157 + $0x8] sm:$0xff]
  %v1160 = vld [vmem:[%s1157 + $0x10] sm:$0xff]
  %v1161 = vld [vmem:[%s1157 + $0x18] sm:$0xff]
  %v1162 = vld [vmem:[%s1157 + $0x20] sm:$0xff]
  %v1163 = vld [vmem:[%s1157 + $0x28] sm:$0xff]
  %v1164 = vld [vmem:[%s1157 + $0x30] sm:$0xff]
  %v1165 = vld [vmem:[%s1157 + $0x38] sm:$0xff]
  %v1166 = vld [vmem:[%s1157 + $0x40] sm:$0xff]
  %v1167 = vld [vmem:[%s1157 + $0x48] sm:$0xff]
  %v1168 = vld [vmem:[%s1157 + $0x50] sm:$0xff]
  %v1169 = vld [vmem:[%s1157 + $0x58] sm:$0xff]
  %v1170 = vld [vmem:[%s1157 + $0x60] sm:$0xff]
  %v1171 = vld [vmem:[%s1157 + $0x68] sm:$0xff]
  %v1172 = vld [vmem:[%s1157 + $0x70] sm:$0xff]
  %v1173 = vld [vmem:[%s1157 + $0x78] sm:$0xff]
  %v1174 = vld [vmem:[%s1157 + $0x80] sm:$0xff]
  %v1175 = vld [vmem:[%s1157 + $0x88] sm:$0xff]
  %v1176 = vld [vmem:[%s1157 + $0x90] sm:$0xff]
  %v1177 = vld [vmem:[%s1157 + $0x98] sm:$0xff]
  %v1178 = vld [vmem:[%s1157 + $0xa0] sm:$0xff]
  %v1179 = vld [vmem:[%s1157 + $0xa8] sm:$0xff]
  %v1180 = vld [vmem:[%s1157 + $0xb0] sm:$0xff]
  %v1181 = vld [vmem:[%s1157 + $0xb8] sm:$0xff]
  %v1182 = vld [vmem:[%s1157 + $0xc0] sm:$0xff]
  %v1183 = vld [vmem:[%s1157 + $0xc8] sm:$0xff]
  %v1184 = vld [vmem:[%s1157 + $0xd0] sm:$0xff]
  %v1185 = vld [vmem:[%s1157 + $0xd8] sm:$0xff]
  %v1186 = vld [vmem:[%s1157 + $0xe0] sm:$0xff]
  %v1187 = vld [vmem:[%s1157 + $0xe8] sm:$0xff]
  %v1188 = vld [vmem:[%s1157 + $0xf0] sm:$0xff]
  %v1189 = vld [vmem:[%s1157 + $0xf8] sm:$0xff]
  %v1190 = vld [vmem:[%s1157 + $0x100] sm:$0xff]
  %v1191 = vld [vmem:[%s1157 + $0x108] sm:$0xff]
  %v1192 = vld [vmem:[%s1157 + $0x110] sm:$0xff]
  %v1193 = vld [vmem:[%s1157 + $0x118] sm:$0xff]
  %v1194 = vld [vmem:[%s1157 + $0x120] sm:$0xff]
  %v1195 = vld [vmem:[%s1157 + $0x128] sm:$0xff]
  %v1196 = vld [vmem:[%s1157 + $0x130] sm:$0xff]
  %v1197 = vld [vmem:[%s1157 + $0x138] sm:$0xff]
  %v1198 = vld [vmem:[%s1157 + $0x140] sm:$0xff]
  %v1199 = vld [vmem:[%s1157 + $0x148] sm:$0xff]
  %v1200 = vld [vmem:[%s1157 + $0x150] sm:$0xff]
  %v1201 = vld [vmem:[%s1157 + $0x158] sm:$0xff]
  %v1202 = vld [vmem:[%s1157 + $0x160] sm:$0xff]
  %v1203 = vld [vmem:[%s1157 + $0x168] sm:$0xff]
  %v1204 = vld [vmem:[%s1157 + $0x170] sm:$0xff]
  %v1205 = vld [vmem:[%s1157 + $0x178] sm:$0xff]
  %v1206 = vld [vmem:[%s1157 + $0x180] sm:$0xff]
  %v1207 = vld [vmem:[%s1157 + $0x188] sm:$0xff]
  %v1208 = vld [vmem:[%s1157 + $0x190] sm:$0xff]
  %v1209 = vld [vmem:[%s1157 + $0x198] sm:$0xff]
  %v1210 = vld [vmem:[%s1157 + $0x1a0] sm:$0xff]
  %v1211 = vld [vmem:[%s1157 + $0x1a8] sm:$0xff]
  %v1212 = vld [vmem:[%s1157 + $0x1b0] sm:$0xff]
  %v1213 = vld [vmem:[%s1157 + $0x1b8] sm:$0xff]
  %v1214 = vld [vmem:[%s1157 + $0x1c0] sm:$0xff]
  %v1215 = vld [vmem:[%s1157 + $0x1c8] sm:$0xff]
  %v1216 = vld [vmem:[%s1157 + $0x1d0] sm:$0xff]
  %v1217 = vld [vmem:[%s1157 + $0x1d8] sm:$0xff]
  %v1218 = vld [vmem:[%s1157 + $0x1e0] sm:$0xff]
  %v1219 = vld [vmem:[%s1157 + $0x1e8] sm:$0xff]
  %v1220 = vld [vmem:[%s1157 + $0x1f0] sm:$0xff]
  %v1221 = vld [vmem:[%s1157 + $0x1f8] sm:$0xff]
  %1222 = vmatprep.subr.mxu0 %v1189
  %1223 = vmatpush1.msra.mxu0 %v1188
  %1224 = vmatprep.subr.mxu0 %v1187
  %1225 = vmatpush1.msra.mxu0 %v1186
  %1226 = vmatprep.subr.mxu0 %v1185
  %1227 = vmatpush1.msra.mxu0 %v1184
  %1228 = vmatprep.subr.mxu0 %v1183
  %1229 = vmatpush1.msra.mxu0 %v1182
  %1230 = vmatprep.subr.mxu0 %v1181
  %1231 = vmatpush1.msra.mxu0 %v1180
  %1232 = vmatprep.subr.mxu0 %v1179
  %1233 = vmatpush1.msra.mxu0 %v1178
  %1234 = vmatprep.subr.mxu0 %v1177
  %1235 = vmatpush1.msra.mxu0 %v1176
  %1236 = vmatprep.subr.mxu0 %v1175
  %1237 = vmatpush1.msra.mxu0 %v1174
  %1238 = vmatprep.subr.mxu0 %v1173
  %1239 = vmatpush1.msra.mxu0 %v1172
  %1240 = vmatprep.subr.mxu0 %v1171
  %1241 = vmatpush1.msra.mxu0 %v1170
  %1242 = vmatprep.subr.mxu0 %v1169
  %1243 = vmatpush1.msra.mxu0 %v1168
  %1244 = vmatprep.subr.mxu0 %v1167
  %1245 = vmatpush1.msra.mxu0 %v1166
  %1246 = vmatprep.subr.mxu0 %v1165
  %1247 = vmatpush1.msra.mxu0 %v1164
  %1248 = vmatprep.subr.mxu0 %v1163
  %1249 = vmatpush1.msra.mxu0 %v1162
  %1250 = vmatprep.subr.mxu0 %v1161
  %1251 = vmatpush1.msra.mxu0 %v1160
  %1252 = vmatprep.subr.mxu0 %v1159
  %1253 = vmatpush1.msra.mxu0 %v1158
  %1254 = vmatprep.subr.mxu0 %v1221
  %1255 = vmatpush2.msra.mxu0 %v1220
  %1256 = vmatprep.subr.mxu0 %v1219
  %1257 = vmatpush2.msra.mxu0 %v1218
  %1258 = vmatprep.subr.mxu0 %v1217
  %1259 = vmatpush2.msra.mxu0 %v1216
  %1260 = vmatprep.subr.mxu0 %v1215
  %1261 = vmatpush2.msra.mxu0 %v1214
  %1262 = vmatprep.subr.mxu0 %v1213
  %1263 = vmatpush2.msra.mxu0 %v1212
  %1264 = vmatprep.subr.mxu0 %v1211
  %1265 = vmatpush2.msra.mxu0 %v1210
  %1266 = vmatprep.subr.mxu0 %v1209
  %1267 = vmatpush2.msra.mxu0 %v1208
  %1268 = vmatprep.subr.mxu0 %v1207
  %1269 = vmatpush2.msra.mxu0 %v1206
  %1270 = vmatprep.subr.mxu0 %v1205
  %1271 = vmatpush2.msra.mxu0 %v1204
  %1272 = vmatprep.subr.mxu0 %v1203
  %1273 = vmatpush2.msra.mxu0 %v1202
  %1274 = vmatprep.subr.mxu0 %v1201
  %1275 = vmatpush2.msra.mxu0 %v1200
  %1276 = vmatprep.subr.mxu0 %v1199
  %1277 = vmatpush2.msra.mxu0 %v1198
  %1278 = vmatprep.subr.mxu0 %v1197
  %1279 = vmatpush2.msra.mxu0 %v1196
  %1280 = vmatprep.subr.mxu0 %v1195
  %1281 = vmatpush2.msra.mxu0 %v1194
  %1282 = vmatprep.subr.mxu0 %v1193
  %1283 = vmatpush2.msra.mxu0 %v1192
  %1284 = vmatprep.subr.mxu0 %v1191
  %1285 = vmatpush2.msra.mxu0 %v1190
  %1286 = vmatprep.mubr.f32.mxu0 %v775
  %1287 = vmatmul.mubr.f32.gmra.mxu0 %v774
  %v1288 = vpop.f32.mrf.mxu0
  %v1289 = vadd.f32 0.0, %v1288
  %v1290 = vpop.f32.mrf.mxu0
  %v1291 = vadd.f32 0.0, %v1290
  %1292 = vmatprep.mubr.f32.mxu0 %v777
  %1293 = vmatmul.mubr.f32.gmra.mxu0 %v776
  %v1294 = vpop.f32.mrf.mxu0
  %v1295 = vadd.f32 0.0, %v1294
  %v1296 = vpop.f32.mrf.mxu0
  %v1297 = vadd.f32 0.0, %v1296
  %1298 = vmatprep.mubr.f32.mxu0 %v783
  %1299 = vmatmul.mubr.f32.gmra.mxu0 %v782
  %v1300 = vpop.f32.mrf.mxu0
  %v1301 = vadd.f32 0.0, %v1300
  %v1302 = vpop.f32.mrf.mxu0
  %v1303 = vadd.f32 0.0, %v1302
  %1304 = vmatprep.mubr.f32.mxu0 %v785
  %1305 = vmatmul.mubr.f32.gmra.mxu0 %v784
  %v1306 = vpop.f32.mrf.mxu0
  %v1307 = vadd.f32 0.0, %v1306
  %v1308 = vpop.f32.mrf.mxu0
  %v1309 = vadd.f32 0.0, %v1308
  %1310 = vmatprep.mubr.f32.mxu0 %v791
  %1311 = vmatmul.mubr.f32.gmra.mxu0 %v790
  %v1312 = vpop.f32.mrf.mxu0
  %v1313 = vadd.f32 0.0, %v1312
  %v1314 = vpop.f32.mrf.mxu0
  %v1315 = vadd.f32 0.0, %v1314
  %1316 = vmatprep.mubr.f32.mxu0 %v793
  %1317 = vmatmul.mubr.f32.gmra.mxu0 %v792
  %v1318 = vpop.f32.mrf.mxu0
  %v1319 = vadd.f32 0.0, %v1318
  %v1320 = vpop.f32.mrf.mxu0
  %v1321 = vadd.f32 0.0, %v1320
  %1322 = vmatprep.mubr.f32.mxu0 %v799
  %1323 = vmatmul.mubr.f32.gmra.mxu0 %v798
  %v1324 = vpop.f32.mrf.mxu0
  %v1325 = vadd.f32 0.0, %v1324
  %v1326 = vpop.f32.mrf.mxu0
  %v1327 = vadd.f32 0.0, %v1326
  %1328 = vmatprep.mubr.f32.mxu0 %v801
  %1329 = vmatmul.mubr.f32.gmra.mxu0 %v800
  %v1330 = vpop.f32.mrf.mxu0
  %v1331 = vadd.f32 0.0, %v1330
  %v1332 = vpop.f32.mrf.mxu0
  %v1333 = vadd.f32 0.0, %v1332
  %1334 = vdwg.mxu0
  %v1335 = vadd.f32 %v1111, %v1289
  %v1336 = vadd.f32 %v1113, %v1291
  %v1337 = vadd.f32 %v1117, %v1295
  %v1338 = vadd.f32 %v1119, %v1297
  %v1339 = vadd.f32 %v1123, %v1301
  %v1340 = vadd.f32 %v1125, %v1303
  %v1341 = vadd.f32 %v1129, %v1307
  %v1342 = vadd.f32 %v1131, %v1309
  %v1343 = vadd.f32 %v1135, %v1313
  %v1344 = vadd.f32 %v1137, %v1315
  %v1345 = vadd.f32 %v1141, %v1319
  %v1346 = vadd.f32 %v1143, %v1321
  %v1347 = vadd.f32 %v1147, %v1325
  %v1348 = vadd.f32 %v1149, %v1327
  %v1349 = vadd.f32 %v1153, %v1331
  %v1350 = vadd.f32 %v1155, %v1333
  %v1351 = vld [vmem:[%s4] sm:$0x3]
  %v1353 = vlaneseq
  %v1354 = vshrl.u32 %v1353, 7
  %v1355 = vsub.s32 0, %v1354
  %v1356 = vrot.slane %v1351, %v1355
  %v1357 = vlaneseq
  %v1358 = vshrl.u32 %v1357, 7
  %v1359 = vsub.s32 1, %v1358
  %v1360 = vrot.slane %v1351, %v1359
  %v1363 = vadd.f32 %v1335, %v1356
  %v1364 = vadd.f32 %v1336, %v1360
  %v1365 = vadd.f32 %v1337, %v1356
  %v1366 = vadd.f32 %v1338, %v1360
  %v1367 = vadd.f32 %v1339, %v1356
  %v1368 = vadd.f32 %v1340, %v1360
  %v1369 = vadd.f32 %v1341, %v1356
  %v1370 = vadd.f32 %v1342, %v1360
  %v1371 = vadd.f32 %v1343, %v1356
  %v1372 = vadd.f32 %v1344, %v1360
  %v1373 = vadd.f32 %v1345, %v1356
  %v1374 = vadd.f32 %v1346, %v1360
  %v1375 = vadd.f32 %v1347, %v1356
  %v1376 = vadd.f32 %v1348, %v1360
  %v1377 = vadd.f32 %v1349, %v1356
  %v1378 = vadd.f32 %v1350, %v1360
  %v1379 = vmax.f32 %v1363, 0.0
  %v1380 = vmax.f32 %v1364, 0.0
  %v1381 = vmax.f32 %v1365, 0.0
  %v1382 = vmax.f32 %v1366, 0.0
  %v1383 = vmax.f32 %v1367, 0.0
  %v1384 = vmax.f32 %v1368, 0.0
  %v1385 = vmax.f32 %v1369, 0.0
  %v1386 = vmax.f32 %v1370, 0.0
  %v1387 = vmax.f32 %v1371, 0.0
  %v1388 = vmax.f32 %v1372, 0.0
  %v1389 = vmax.f32 %v1373, 0.0
  %v1390 = vmax.f32 %v1374, 0.0
  %v1391 = vmax.f32 %v1375, 0.0
  %v1392 = vmax.f32 %v1376, 0.0
  %v1393 = vmax.f32 %v1377, 0.0
  %v1394 = vmax.f32 %v1378, 0.0
  %v1395 = vld [vmem:[%s5] sm:$0xff]
  %v1396 = vld [vmem:[%s5 + $0x8] sm:$0xff]
  %v1397 = vld [vmem:[%s5 + $0x10] sm:$0xff]
  %v1398 = vld [vmem:[%s5 + $0x18] sm:$0xff]
  %v1399 = vld [vmem:[%s5 + $0x20] sm:$0xff]
  %v1400 = vld [vmem:[%s5 + $0x28] sm:$0xff]
  %v1401 = vld [vmem:[%s5 + $0x30] sm:$0xff]
  %v1402 = vld [vmem:[%s5 + $0x38] sm:$0xff]
  %v1403 = vld [vmem:[%s5 + $0x40] sm:$0xff]
  %v1404 = vld [vmem:[%s5 + $0x48] sm:$0xff]
  %v1405 = vld [vmem:[%s5 + $0x50] sm:$0xff]
  %v1406 = vld [vmem:[%s5 + $0x58] sm:$0xff]
  %v1407 = vld [vmem:[%s5 + $0x60] sm:$0xff]
  %v1408 = vld [vmem:[%s5 + $0x68] sm:$0xff]
  %v1409 = vld [vmem:[%s5 + $0x70] sm:$0xff]
  %v1410 = vld [vmem:[%s5 + $0x78] sm:$0xff]
  %v1411 = vld [vmem:[%s5 + $0x80] sm:$0xff]
  %v1412 = vld [vmem:[%s5 + $0x88] sm:$0xff]
  %v1413 = vld [vmem:[%s5 + $0x90] sm:$0xff]
  %v1414 = vld [vmem:[%s5 + $0x98] sm:$0xff]
  %v1415 = vld [vmem:[%s5 + $0xa0] sm:$0xff]
  %v1416 = vld [vmem:[%s5 + $0xa8] sm:$0xff]
  %v1417 = vld [vmem:[%s5 + $0xb0] sm:$0xff]
  %v1418 = vld [vmem:[%s5 + $0xb8] sm:$0xff]
  %v1419 = vld [vmem:[%s5 + $0xc0] sm:$0xff]
  %v1420 = vld [vmem:[%s5 + $0xc8] sm:$0xff]
  %v1421 = vld [vmem:[%s5 + $0xd0] sm:$0xff]
  %v1422 = vld [vmem:[%s5 + $0xd8] sm:$0xff]
  %v1423 = vld [vmem:[%s5 + $0xe0] sm:$0xff]
  %v1424 = vld [vmem:[%s5 + $0xe8] sm:$0xff]
  %v1425 = vld [vmem:[%s5 + $0xf0] sm:$0xff]
  %v1426 = vld [vmem:[%s5 + $0xf8] sm:$0xff]
  %s1427 = scalar_lea.vmem %s5, 256
  %v1428 = vld [vmem:[%s1427] sm:$0xff]
  %v1429 = vld [vmem:[%s1427 + $0x8] sm:$0xff]
  %v1430 = vld [vmem:[%s1427 + $0x10] sm:$0xff]
  %v1431 = vld [vmem:[%s1427 + $0x18] sm:$0xff]
  %v1432 = vld [vmem:[%s1427 + $0x20] sm:$0xff]
  %v1433 = vld [vmem:[%s1427 + $0x28] sm:$0xff]
  %v1434 = vld [vmem:[%s1427 + $0x30] sm:$0xff]
  %v1435 = vld [vmem:[%s1427 + $0x38] sm:$0xff]
  %v1436 = vld [vmem:[%s1427 + $0x40] sm:$0xff]
  %v1437 = vld [vmem:[%s1427 + $0x48] sm:$0xff]
  %v1438 = vld [vmem:[%s1427 + $0x50] sm:$0xff]
  %v1439 = vld [vmem:[%s1427 + $0x58] sm:$0xff]
  %v1440 = vld [vmem:[%s1427 + $0x60] sm:$0xff]
  %v1441 = vld [vmem:[%s1427 + $0x68] sm:$0xff]
  %v1442 = vld [vmem:[%s1427 + $0x70] sm:$0xff]
  %v1443 = vld [vmem:[%s1427 + $0x78] sm:$0xff]
  %v1444 = vld [vmem:[%s1427 + $0x80] sm:$0xff]
  %v1445 = vld [vmem:[%s1427 + $0x88] sm:$0xff]
  %v1446 = vld [vmem:[%s1427 + $0x90] sm:$0xff]
  %v1447 = vld [vmem:[%s1427 + $0x98] sm:$0xff]
  %v1448 = vld [vmem:[%s1427 + $0xa0] sm:$0xff]
  %v1449 = vld [vmem:[%s1427 + $0xa8] sm:$0xff]
  %v1450 = vld [vmem:[%s1427 + $0xb0] sm:$0xff]
  %v1451 = vld [vmem:[%s1427 + $0xb8] sm:$0xff]
  %v1452 = vld [vmem:[%s1427 + $0xc0] sm:$0xff]
  %v1453 = vld [vmem:[%s1427 + $0xc8] sm:$0xff]
  %v1454 = vld [vmem:[%s1427 + $0xd0] sm:$0xff]
  %v1455 = vld [vmem:[%s1427 + $0xd8] sm:$0xff]
  %v1456 = vld [vmem:[%s1427 + $0xe0] sm:$0xff]
  %v1457 = vld [vmem:[%s1427 + $0xe8] sm:$0xff]
  %v1458 = vld [vmem:[%s1427 + $0xf0] sm:$0xff]
  %v1459 = vld [vmem:[%s1427 + $0xf8] sm:$0xff]
  %1460 = vmatprep.subr.mxu0 0.0
  %1461 = vmatpush1.msra.mxu0 %v1443
  %1462 = vmatprep.subr.mxu0 0.0
  %1463 = vmatpush1.msra.mxu0 %v1442
  %1464 = vmatprep.subr.mxu0 0.0
  %1465 = vmatpush1.msra.mxu0 %v1441
  %1466 = vmatprep.subr.mxu0 0.0
  %1467 = vmatpush1.msra.mxu0 %v1440
  %1468 = vmatprep.subr.mxu0 0.0
  %1469 = vmatpush1.msra.mxu0 %v1439
  %1470 = vmatprep.subr.mxu0 0.0
  %1471 = vmatpush1.msra.mxu0 %v1438
  %1472 = vmatprep.subr.mxu0 0.0
  %1473 = vmatpush1.msra.mxu0 %v1437
  %1474 = vmatprep.subr.mxu0 0.0
  %1475 = vmatpush1.msra.mxu0 %v1436
  %1476 = vmatprep.subr.mxu0 0.0
  %1477 = vmatpush1.msra.mxu0 %v1435
  %1478 = vmatprep.subr.mxu0 0.0
  %1479 = vmatpush1.msra.mxu0 %v1434
  %1480 = vmatprep.subr.mxu0 0.0
  %1481 = vmatpush1.msra.mxu0 %v1433
  %1482 = vmatprep.subr.mxu0 0.0
  %1483 = vmatpush1.msra.mxu0 %v1432
  %1484 = vmatprep.subr.mxu0 0.0
  %1485 = vmatpush1.msra.mxu0 %v1431
  %1486 = vmatprep.subr.mxu0 0.0
  %1487 = vmatpush1.msra.mxu0 %v1430
  %1488 = vmatprep.subr.mxu0 0.0
  %1489 = vmatpush1.msra.mxu0 %v1429
  %1490 = vmatprep.subr.mxu0 0.0
  %1491 = vmatpush1.msra.mxu0 %v1428
  %1492 = vmatprep.subr.mxu0 0.0
  %1493 = vmatpush2.msra.mxu0 %v1459
  %1494 = vmatprep.subr.mxu0 0.0
  %1495 = vmatpush2.msra.mxu0 %v1458
  %1496 = vmatprep.subr.mxu0 0.0
  %1497 = vmatpush2.msra.mxu0 %v1457
  %1498 = vmatprep.subr.mxu0 0.0
  %1499 = vmatpush2.msra.mxu0 %v1456
  %1500 = vmatprep.subr.mxu0 0.0
  %1501 = vmatpush2.msra.mxu0 %v1455
  %1502 = vmatprep.subr.mxu0 0.0
  %1503 = vmatpush2.msra.mxu0 %v1454
  %1504 = vmatprep.subr.mxu0 0.0
  %1505 = vmatpush2.msra.mxu0 %v1453
  %1506 = vmatprep.subr.mxu0 0.0
  %1507 = vmatpush2.msra.mxu0 %v1452
  %1508 = vmatprep.subr.mxu0 0.0
  %1509 = vmatpush2.msra.mxu0 %v1451
  %1510 = vmatprep.subr.mxu0 0.0
  %1511 = vmatpush2.msra.mxu0 %v1450
  %1512 = vmatprep.subr.mxu0 0.0
  %1513 = vmatpush2.msra.mxu0 %v1449
  %1514 = vmatprep.subr.mxu0 0.0
  %1515 = vmatpush2.msra.mxu0 %v1448
  %1516 = vmatprep.subr.mxu0 0.0
  %1517 = vmatpush2.msra.mxu0 %v1447
  %1518 = vmatprep.subr.mxu0 0.0
  %1519 = vmatpush2.msra.mxu0 %v1446
  %1520 = vmatprep.subr.mxu0 0.0
  %1521 = vmatpush2.msra.mxu0 %v1445
  %1522 = vmatprep.subr.mxu0 0.0
  %1523 = vmatpush2.msra.mxu0 %v1444
  %1524 = vmatprep.mubr.f32.mxu0 %v1384
  %1525 = vmatmul.mubr.f32.gmra.mxu0 %v1383
  %v1526 = vpop.f32.mrf.mxu0
  %v1527 = vadd.f32 0.0, %v1526
  %v1528 = vpop.f32.mrf.mxu0
  %1529 = vmatprep.mubr.f32.mxu0 %v1386
  %1530 = vmatmul.mubr.f32.gmra.mxu0 %v1385
  %v1531 = vpop.f32.mrf.mxu0
  %v1532 = vadd.f32 0.0, %v1531
  %v1533 = vpop.f32.mrf.mxu0
  %1534 = vdwg.mxu0
  %1535 = vmatprep.subr.mxu0 0.0
  %1536 = vmatpush1.msra.mxu0 %v1410
  %1537 = vmatprep.subr.mxu0 0.0
  %1538 = vmatpush1.msra.mxu0 %v1409
  %1539 = vmatprep.subr.mxu0 0.0
  %1540 = vmatpush1.msra.mxu0 %v1408
  %1541 = vmatprep.subr.mxu0 0.0
  %1542 = vmatpush1.msra.mxu0 %v1407
  %1543 = vmatprep.subr.mxu0 0.0
  %1544 = vmatpush1.msra.mxu0 %v1406
  %1545 = vmatprep.subr.mxu0 0.0
  %1546 = vmatpush1.msra.mxu0 %v1405
  %1547 = vmatprep.subr.mxu0 0.0
  %1548 = vmatpush1.msra.mxu0 %v1404
  %1549 = vmatprep.subr.mxu0 0.0
  %1550 = vmatpush1.msra.mxu0 %v1403
  %1551 = vmatprep.subr.mxu0 0.0
  %1552 = vmatpush1.msra.mxu0 %v1402
  %1553 = vmatprep.subr.mxu0 0.0
  %1554 = vmatpush1.msra.mxu0 %v1401
  %1555 = vmatprep.subr.mxu0 0.0
  %1556 = vmatpush1.msra.mxu0 %v1400
  %1557 = vmatprep.subr.mxu0 0.0
  %1558 = vmatpush1.msra.mxu0 %v1399
  %1559 = vmatprep.subr.mxu0 0.0
  %1560 = vmatpush1.msra.mxu0 %v1398
  %1561 = vmatprep.subr.mxu0 0.0
  %1562 = vmatpush1.msra.mxu0 %v1397
  %1563 = vmatprep.subr.mxu0 0.0
  %1564 = vmatpush1.msra.mxu0 %v1396
  %1565 = vmatprep.subr.mxu0 0.0
  %1566 = vmatpush1.msra.mxu0 %v1395
  %1567 = vmatprep.subr.mxu0 0.0
  %1568 = vmatpush2.msra.mxu0 %v1426
  %1569 = vmatprep.subr.mxu0 0.0
  %1570 = vmatpush2.msra.mxu0 %v1425
  %1571 = vmatprep.subr.mxu0 0.0
  %1572 = vmatpush2.msra.mxu0 %v1424
  %1573 = vmatprep.subr.mxu0 0.0
  %1574 = vmatpush2.msra.mxu0 %v1423
  %1575 = vmatprep.subr.mxu0 0.0
  %1576 = vmatpush2.msra.mxu0 %v1422
  %1577 = vmatprep.subr.mxu0 0.0
  %1578 = vmatpush2.msra.mxu0 %v1421
  %1579 = vmatprep.subr.mxu0 0.0
  %1580 = vmatpush2.msra.mxu0 %v1420
  %1581 = vmatprep.subr.mxu0 0.0
  %1582 = vmatpush2.msra.mxu0 %v1419
  %1583 = vmatprep.subr.mxu0 0.0
  %1584 = vmatpush2.msra.mxu0 %v1418
  %1585 = vmatprep.subr.mxu0 0.0
  %1586 = vmatpush2.msra.mxu0 %v1417
  %1587 = vmatprep.subr.mxu0 0.0
  %1588 = vmatpush2.msra.mxu0 %v1416
  %1589 = vmatprep.subr.mxu0 0.0
  %1590 = vmatpush2.msra.mxu0 %v1415
  %1591 = vmatprep.subr.mxu0 0.0
  %1592 = vmatpush2.msra.mxu0 %v1414
  %1593 = vmatprep.subr.mxu0 0.0
  %1594 = vmatpush2.msra.mxu0 %v1413
  %1595 = vmatprep.subr.mxu0 0.0
  %1596 = vmatpush2.msra.mxu0 %v1412
  %1597 = vmatprep.subr.mxu0 0.0
  %1598 = vmatpush2.msra.mxu0 %v1411
  %1599 = vmatprep.mubr.f32.mxu0 %v1380
  %1600 = vmatmul.mubr.f32.gmra.mxu0 %v1379
  %v1601 = vpop.f32.mrf.mxu0
  %v1602 = vadd.f32 %v1527, %v1601
  %v1603 = vpop.f32.mrf.mxu0
  %1604 = vmatprep.mubr.f32.mxu0 %v1382
  %1605 = vmatmul.mubr.f32.gmra.mxu0 %v1381
  %v1606 = vpop.f32.mrf.mxu0
  %v1607 = vadd.f32 %v1532, %v1606
  %v1608 = vpop.f32.mrf.mxu0
  %1609 = vdwg.mxu0
  %s1610 = scalar_lea.vmem %s5, 512
  %v1611 = vld [vmem:[%s1610] sm:$0xff]
  %v1612 = vld [vmem:[%s1610 + $0x8] sm:$0xff]
  %v1613 = vld [vmem:[%s1610 + $0x10] sm:$0xff]
  %v1614 = vld [vmem:[%s1610 + $0x18] sm:$0xff]
  %v1615 = vld [vmem:[%s1610 + $0x20] sm:$0xff]
  %v1616 = vld [vmem:[%s1610 + $0x28] sm:$0xff]
  %v1617 = vld [vmem:[%s1610 + $0x30] sm:$0xff]
  %v1618 = vld [vmem:[%s1610 + $0x38] sm:$0xff]
  %v1619 = vld [vmem:[%s1610 + $0x40] sm:$0xff]
  %v1620 = vld [vmem:[%s1610 + $0x48] sm:$0xff]
  %v1621 = vld [vmem:[%s1610 + $0x50] sm:$0xff]
  %v1622 = vld [vmem:[%s1610 + $0x58] sm:$0xff]
  %v1623 = vld [vmem:[%s1610 + $0x60] sm:$0xff]
  %v1624 = vld [vmem:[%s1610 + $0x68] sm:$0xff]
  %v1625 = vld [vmem:[%s1610 + $0x70] sm:$0xff]
  %v1626 = vld [vmem:[%s1610 + $0x78] sm:$0xff]
  %v1627 = vld [vmem:[%s1610 + $0x80] sm:$0xff]
  %v1628 = vld [vmem:[%s1610 + $0x88] sm:$0xff]
  %v1629 = vld [vmem:[%s1610 + $0x90] sm:$0xff]
  %v1630 = vld [vmem:[%s1610 + $0x98] sm:$0xff]
  %v1631 = vld [vmem:[%s1610 + $0xa0] sm:$0xff]
  %v1632 = vld [vmem:[%s1610 + $0xa8] sm:$0xff]
  %v1633 = vld [vmem:[%s1610 + $0xb0] sm:$0xff]
  %v1634 = vld [vmem:[%s1610 + $0xb8] sm:$0xff]
  %v1635 = vld [vmem:[%s1610 + $0xc0] sm:$0xff]
  %v1636 = vld [vmem:[%s1610 + $0xc8] sm:$0xff]
  %v1637 = vld [vmem:[%s1610 + $0xd0] sm:$0xff]
  %v1638 = vld [vmem:[%s1610 + $0xd8] sm:$0xff]
  %v1639 = vld [vmem:[%s1610 + $0xe0] sm:$0xff]
  %v1640 = vld [vmem:[%s1610 + $0xe8] sm:$0xff]
  %v1641 = vld [vmem:[%s1610 + $0xf0] sm:$0xff]
  %v1642 = vld [vmem:[%s1610 + $0xf8] sm:$0xff]
  %1643 = vmatprep.subr.mxu0 0.0
  %1644 = vmatpush1.msra.mxu0 %v1626
  %1645 = vmatprep.subr.mxu0 0.0
  %1646 = vmatpush1.msra.mxu0 %v1625
  %1647 = vmatprep.subr.mxu0 0.0
  %1648 = vmatpush1.msra.mxu0 %v1624
  %1649 = vmatprep.subr.mxu0 0.0
  %1650 = vmatpush1.msra.mxu0 %v1623
  %1651 = vmatprep.subr.mxu0 0.0
  %1652 = vmatpush1.msra.mxu0 %v1622
  %1653 = vmatprep.subr.mxu0 0.0
  %1654 = vmatpush1.msra.mxu0 %v1621
  %1655 = vmatprep.subr.mxu0 0.0
  %1656 = vmatpush1.msra.mxu0 %v1620
  %1657 = vmatprep.subr.mxu0 0.0
  %1658 = vmatpush1.msra.mxu0 %v1619
  %1659 = vmatprep.subr.mxu0 0.0
  %1660 = vmatpush1.msra.mxu0 %v1618
  %1661 = vmatprep.subr.mxu0 0.0
  %1662 = vmatpush1.msra.mxu0 %v1617
  %1663 = vmatprep.subr.mxu0 0.0
  %1664 = vmatpush1.msra.mxu0 %v1616
  %1665 = vmatprep.subr.mxu0 0.0
  %1666 = vmatpush1.msra.mxu0 %v1615
  %1667 = vmatprep.subr.mxu0 0.0
  %1668 = vmatpush1.msra.mxu0 %v1614
  %1669 = vmatprep.subr.mxu0 0.0
  %1670 = vmatpush1.msra.mxu0 %v1613
  %1671 = vmatprep.subr.mxu0 0.0
  %1672 = vmatpush1.msra.mxu0 %v1612
  %1673 = vmatprep.subr.mxu0 0.0
  %1674 = vmatpush1.msra.mxu0 %v1611
  %1675 = vmatprep.subr.mxu0 0.0
  %1676 = vmatpush2.msra.mxu0 %v1642
  %1677 = vmatprep.subr.mxu0 0.0
  %1678 = vmatpush2.msra.mxu0 %v1641
  %1679 = vmatprep.subr.mxu0 0.0
  %1680 = vmatpush2.msra.mxu0 %v1640
  %1681 = vmatprep.subr.mxu0 0.0
  %1682 = vmatpush2.msra.mxu0 %v1639
  %1683 = vmatprep.subr.mxu0 0.0
  %1684 = vmatpush2.msra.mxu0 %v1638
  %1685 = vmatprep.subr.mxu0 0.0
  %1686 = vmatpush2.msra.mxu0 %v1637
  %1687 = vmatprep.subr.mxu0 0.0
  %1688 = vmatpush2.msra.mxu0 %v1636
  %1689 = vmatprep.subr.mxu0 0.0
  %1690 = vmatpush2.msra.mxu0 %v1635
  %1691 = vmatprep.subr.mxu0 0.0
  %1692 = vmatpush2.msra.mxu0 %v1634
  %1693 = vmatprep.subr.mxu0 0.0
  %1694 = vmatpush2.msra.mxu0 %v1633
  %1695 = vmatprep.subr.mxu0 0.0
  %1696 = vmatpush2.msra.mxu0 %v1632
  %1697 = vmatprep.subr.mxu0 0.0
  %1698 = vmatpush2.msra.mxu0 %v1631
  %1699 = vmatprep.subr.mxu0 0.0
  %1700 = vmatpush2.msra.mxu0 %v1630
  %1701 = vmatprep.subr.mxu0 0.0
  %1702 = vmatpush2.msra.mxu0 %v1629
  %1703 = vmatprep.subr.mxu0 0.0
  %1704 = vmatpush2.msra.mxu0 %v1628
  %1705 = vmatprep.subr.mxu0 0.0
  %1706 = vmatpush2.msra.mxu0 %v1627
  %1707 = vmatprep.mubr.f32.mxu0 %v1388
  %1708 = vmatmul.mubr.f32.gmra.mxu0 %v1387
  %v1709 = vpop.f32.mrf.mxu0
  %v1710 = vadd.f32 0.0, %v1709
  %v1711 = vpop.f32.mrf.mxu0
  %1712 = vmatprep.mubr.f32.mxu0 %v1390
  %1713 = vmatmul.mubr.f32.gmra.mxu0 %v1389
  %v1714 = vpop.f32.mrf.mxu0
  %v1715 = vadd.f32 0.0, %v1714
  %v1716 = vpop.f32.mrf.mxu0
  %1717 = vdwg.mxu0
  %v1718 = vadd.f32 %v1602, %v1710
  %v1719 = vadd.f32 %v1607, %v1715
  %s1720 = scalar_lea.vmem %s5, 768
  %v1721 = vld [vmem:[%s1720] sm:$0xff]
  %v1722 = vld [vmem:[%s1720 + $0x8] sm:$0xff]
  %v1723 = vld [vmem:[%s1720 + $0x10] sm:$0xff]
  %v1724 = vld [vmem:[%s1720 + $0x18] sm:$0xff]
  %v1725 = vld [vmem:[%s1720 + $0x20] sm:$0xff]
  %v1726 = vld [vmem:[%s1720 + $0x28] sm:$0xff]
  %v1727 = vld [vmem:[%s1720 + $0x30] sm:$0xff]
  %v1728 = vld [vmem:[%s1720 + $0x38] sm:$0xff]
  %v1729 = vld [vmem:[%s1720 + $0x40] sm:$0xff]
  %v1730 = vld [vmem:[%s1720 + $0x48] sm:$0xff]
  %v1731 = vld [vmem:[%s1720 + $0x50] sm:$0xff]
  %v1732 = vld [vmem:[%s1720 + $0x58] sm:$0xff]
  %v1733 = vld [vmem:[%s1720 + $0x60] sm:$0xff]
  %v1734 = vld [vmem:[%s1720 + $0x68] sm:$0xff]
  %v1735 = vld [vmem:[%s1720 + $0x70] sm:$0xff]
  %v1736 = vld [vmem:[%s1720 + $0x78] sm:$0xff]
  %v1737 = vld [vmem:[%s1720 + $0x80] sm:$0xff]
  %v1738 = vld [vmem:[%s1720 + $0x88] sm:$0xff]
  %v1739 = vld [vmem:[%s1720 + $0x90] sm:$0xff]
  %v1740 = vld [vmem:[%s1720 + $0x98] sm:$0xff]
  %v1741 = vld [vmem:[%s1720 + $0xa0] sm:$0xff]
  %v1742 = vld [vmem:[%s1720 + $0xa8] sm:$0xff]
  %v1743 = vld [vmem:[%s1720 + $0xb0] sm:$0xff]
  %v1744 = vld [vmem:[%s1720 + $0xb8] sm:$0xff]
  %v1745 = vld [vmem:[%s1720 + $0xc0] sm:$0xff]
  %v1746 = vld [vmem:[%s1720 + $0xc8] sm:$0xff]
  %v1747 = vld [vmem:[%s1720 + $0xd0] sm:$0xff]
  %v1748 = vld [vmem:[%s1720 + $0xd8] sm:$0xff]
  %v1749 = vld [vmem:[%s1720 + $0xe0] sm:$0xff]
  %v1750 = vld [vmem:[%s1720 + $0xe8] sm:$0xff]
  %v1751 = vld [vmem:[%s1720 + $0xf0] sm:$0xff]
  %v1752 = vld [vmem:[%s1720 + $0xf8] sm:$0xff]
  %1753 = vmatprep.subr.mxu0 0.0
  %1754 = vmatpush1.msra.mxu0 %v1736
  %1755 = vmatprep.subr.mxu0 0.0
  %1756 = vmatpush1.msra.mxu0 %v1735
  %1757 = vmatprep.subr.mxu0 0.0
  %1758 = vmatpush1.msra.mxu0 %v1734
  %1759 = vmatprep.subr.mxu0 0.0
  %1760 = vmatpush1.msra.mxu0 %v1733
  %1761 = vmatprep.subr.mxu0 0.0
  %1762 = vmatpush1.msra.mxu0 %v1732
  %1763 = vmatprep.subr.mxu0 0.0
  %1764 = vmatpush1.msra.mxu0 %v1731
  %1765 = vmatprep.subr.mxu0 0.0
  %1766 = vmatpush1.msra.mxu0 %v1730
  %1767 = vmatprep.subr.mxu0 0.0
  %1768 = vmatpush1.msra.mxu0 %v1729
  %1769 = vmatprep.subr.mxu0 0.0
  %1770 = vmatpush1.msra.mxu0 %v1728
  %1771 = vmatprep.subr.mxu0 0.0
  %1772 = vmatpush1.msra.mxu0 %v1727
  %1773 = vmatprep.subr.mxu0 0.0
  %1774 = vmatpush1.msra.mxu0 %v1726
  %1775 = vmatprep.subr.mxu0 0.0
  %1776 = vmatpush1.msra.mxu0 %v1725
  %1777 = vmatprep.subr.mxu0 0.0
  %1778 = vmatpush1.msra.mxu0 %v1724
  %1779 = vmatprep.subr.mxu0 0.0
  %1780 = vmatpush1.msra.mxu0 %v1723
  %1781 = vmatprep.subr.mxu0 0.0
  %1782 = vmatpush1.msra.mxu0 %v1722
  %1783 = vmatprep.subr.mxu0 0.0
  %1784 = vmatpush1.msra.mxu0 %v1721
  %1785 = vmatprep.subr.mxu0 0.0
  %1786 = vmatpush2.msra.mxu0 %v1752
  %1787 = vmatprep.subr.mxu0 0.0
  %1788 = vmatpush2.msra.mxu0 %v1751
  %1789 = vmatprep.subr.mxu0 0.0
  %1790 = vmatpush2.msra.mxu0 %v1750
  %1791 = vmatprep.subr.mxu0 0.0
  %1792 = vmatpush2.msra.mxu0 %v1749
  %1793 = vmatprep.subr.mxu0 0.0
  %1794 = vmatpush2.msra.mxu0 %v1748
  %1795 = vmatprep.subr.mxu0 0.0
  %1796 = vmatpush2.msra.mxu0 %v1747
  %1797 = vmatprep.subr.mxu0 0.0
  %1798 = vmatpush2.msra.mxu0 %v1746
  %1799 = vmatprep.subr.mxu0 0.0
  %1800 = vmatpush2.msra.mxu0 %v1745
  %1801 = vmatprep.subr.mxu0 0.0
  %1802 = vmatpush2.msra.mxu0 %v1744
  %1803 = vmatprep.subr.mxu0 0.0
  %1804 = vmatpush2.msra.mxu0 %v1743
  %1805 = vmatprep.subr.mxu0 0.0
  %1806 = vmatpush2.msra.mxu0 %v1742
  %1807 = vmatprep.subr.mxu0 0.0
  %1808 = vmatpush2.msra.mxu0 %v1741
  %1809 = vmatprep.subr.mxu0 0.0
  %1810 = vmatpush2.msra.mxu0 %v1740
  %1811 = vmatprep.subr.mxu0 0.0
  %1812 = vmatpush2.msra.mxu0 %v1739
  %1813 = vmatprep.subr.mxu0 0.0
  %1814 = vmatpush2.msra.mxu0 %v1738
  %1815 = vmatprep.subr.mxu0 0.0
  %1816 = vmatpush2.msra.mxu0 %v1737
  %1817 = vmatprep.mubr.f32.mxu0 %v1392
  %1818 = vmatmul.mubr.f32.gmra.mxu0 %v1391
  %v1819 = vpop.f32.mrf.mxu0
  %v1820 = vadd.f32 0.0, %v1819
  %v1821 = vpop.f32.mrf.mxu0
  %1822 = vmatprep.mubr.f32.mxu0 %v1394
  %1823 = vmatmul.mubr.f32.gmra.mxu0 %v1393
  %v1824 = vpop.f32.mrf.mxu0
  %v1825 = vadd.f32 0.0, %v1824
  %v1826 = vpop.f32.mrf.mxu0
  %1827 = vdwg.mxu0
  %v1828 = vadd.f32 %v1718, %v1820
  %v1829 = vadd.f32 %v1719, %v1825
  %v1830 = vld [vmem:[%s6] sm:$0x1]
  %v1832 = vlaneseq
  %v1833 = vshrl.u32 %v1832, 7
  %v1834 = vsub.s32 0, %v1833
  %v1835 = vrot.slane %v1830, %v1834
  %v1837 = vadd.f32 %v1828, %v1835
  %v1838 = vadd.f32 %v1829, %v1835
  %v1839 = vmax.f32 %v1837, 0.0
  %v1840 = vmax.f32 %v1838, 0.0
  %v1841 = vld [vmem:[%s7] sm:$0xff]
  %v1842 = vld [vmem:[%s7 + $0x8] sm:$0xff]
  %v1843 = vld [vmem:[%s7 + $0x10] sm:$0xff]
  %v1844 = vld [vmem:[%s7 + $0x18] sm:$0xff]
  %v1845 = vld [vmem:[%s7 + $0x20] sm:$0xff]
  %v1846 = vld [vmem:[%s7 + $0x28] sm:$0xff]
  %v1847 = vld [vmem:[%s7 + $0x30] sm:$0xff]
  %v1848 = vld [vmem:[%s7 + $0x38] sm:$0xff]
  %v1849 = vld [vmem:[%s8] sm:$0x1]
  %v1851 = vlaneseq
  %v1852 = vshrl.u32 %v1851, 7
  %v1853 = vsub.s32 0, %v1852
  %v1854 = vrot.slane %v1849, %v1853
  %vm1856 = vcmask 523264
  %v1858 = vsel %vm1856, %v1839, 0
  %v1861 = vsel %vm1856, %v1840, 0
  %1863 = vmatprep.subr.mxu0 0.0
  %1864 = vmatpush1.msra.mxu0 0.0
  %1865 = vmatprep.subr.mxu0 0.0
  %1866 = vmatpush1.msra.mxu0 0.0
  %1867 = vmatprep.subr.mxu0 0.0
  %1868 = vmatpush1.msra.mxu0 0.0
  %1869 = vmatprep.subr.mxu0 0.0
  %1870 = vmatpush1.msra.mxu0 0.0
  %1871 = vmatprep.subr.mxu0 0.0
  %1872 = vmatpush1.msra.mxu0 0.0
  %1873 = vmatprep.subr.mxu0 0.0
  %1874 = vmatpush1.msra.mxu0 0.0
  %1875 = vmatprep.subr.mxu0 0.0
  %1876 = vmatpush1.msra.mxu0 0.0
  %1877 = vmatprep.subr.mxu0 0.0
  %1878 = vmatpush1.msra.mxu0 0.0
  %1879 = vmatprep.subr.mxu0 0.0
  %1880 = vmatpush1.msra.mxu0 %v1848
  %1881 = vmatprep.subr.mxu0 0.0
  %1882 = vmatpush1.msra.mxu0 %v1847
  %1883 = vmatprep.subr.mxu0 0.0
  %1884 = vmatpush1.msra.mxu0 %v1846
  %1885 = vmatprep.subr.mxu0 0.0
  %1886 = vmatpush1.msra.mxu0 %v1845
  %1887 = vmatprep.subr.mxu0 0.0
  %1888 = vmatpush1.msra.mxu0 %v1844
  %1889 = vmatprep.subr.mxu0 0.0
  %1890 = vmatpush1.msra.mxu0 %v1843
  %1891 = vmatprep.subr.mxu0 0.0
  %1892 = vmatpush1.msra.mxu0 %v1842
  %1893 = vmatprep.subr.mxu0 0.0
  %1894 = vmatpush1.msra.mxu0 %v1841
  %1895 = vmatprep.subr.mxu0 0.0
  %1896 = vmatpush2.msra.mxu0 0.0
  %1897 = vmatprep.subr.mxu0 0.0
  %1898 = vmatpush2.msra.mxu0 0.0
  %1899 = vmatprep.subr.mxu0 0.0
  %1900 = vmatpush2.msra.mxu0 0.0
  %1901 = vmatprep.subr.mxu0 0.0
  %1902 = vmatpush2.msra.mxu0 0.0
  %1903 = vmatprep.subr.mxu0 0.0
  %1904 = vmatpush2.msra.mxu0 0.0
  %1905 = vmatprep.subr.mxu0 0.0
  %1906 = vmatpush2.msra.mxu0 0.0
  %1907 = vmatprep.subr.mxu0 0.0
  %1908 = vmatpush2.msra.mxu0 0.0
  %1909 = vmatprep.subr.mxu0 0.0
  %1910 = vmatpush2.msra.mxu0 0.0
  %1911 = vmatprep.subr.mxu0 0.0
  %1912 = vmatpush2.msra.mxu0 0.0
  %1913 = vmatprep.subr.mxu0 0.0
  %1914 = vmatpush2.msra.mxu0 0.0
  %1915 = vmatprep.subr.mxu0 0.0
  %1916 = vmatpush2.msra.mxu0 0.0
  %1917 = vmatprep.subr.mxu0 0.0
  %1918 = vmatpush2.msra.mxu0 0.0
  %1919 = vmatprep.subr.mxu0 0.0
  %1920 = vmatpush2.msra.mxu0 0.0
  %1921 = vmatprep.subr.mxu0 0.0
  %1922 = vmatpush2.msra.mxu0 0.0
  %1923 = vmatprep.subr.mxu0 0.0
  %1924 = vmatpush2.msra.mxu0 0.0
  %1925 = vmatprep.subr.mxu0 0.0
  %1926 = vmatpush2.msra.mxu0 0.0
  %1927 = vmatprep.mubr.f32.mxu0 0.0
  %1928 = vmatmul.mubr.f32.gmra.mxu0 %v1858
  %v1929 = vpop.f32.mrf.mxu0
  %v1930 = vadd.f32 %v1854, %v1929
  %v1931 = vpop.f32.mrf.mxu0
  %1932 = vmatprep.mubr.f32.mxu0 0.0
  %1933 = vmatmul.mubr.f32.gmra.mxu0 %v1861
  %v1934 = vpop.f32.mrf.mxu0
  %v1935 = vadd.f32 %v1854, %v1934
  %v1936 = vpop.f32.mrf.mxu0
  %1937 = vdwg.mxu0
  %v1938 = vmax.f32 %v1930, 0.0
  %v1939 = vmax.f32 %v1935, 0.0
  %v1940 = vld [vmem:[%s9] sm:$0xff]
  %v1941 = vld [vmem:[%s10] sm:$0x1]
  %v1943 = vlaneseq
  %v1944 = vshrl.u32 %v1943, 7
  %v1945 = vsub.s32 0, %v1944
  %v1946 = vrot.slane %v1941, %v1945
  %vm1948 = vcmask 64512
  %v1950 = vsel %vm1948, %v1938, 0
  %v1953 = vsel %vm1948, %v1939, 0
  %1955 = vmatprep.subr.mxu0 0.0
  %1956 = vmatpush1.msra.mxu0 0.0
  %1957 = vmatprep.subr.mxu0 0.0
  %1958 = vmatpush1.msra.mxu0 0.0
  %1959 = vmatprep.subr.mxu0 0.0
  %1960 = vmatpush1.msra.mxu0 0.0
  %1961 = vmatprep.subr.mxu0 0.0
  %1962 = vmatpush1.msra.mxu0 0.0
  %1963 = vmatprep.subr.mxu0 0.0
  %1964 = vmatpush1.msra.mxu0 0.0
  %1965 = vmatprep.subr.mxu0 0.0
  %1966 = vmatpush1.msra.mxu0 0.0
  %1967 = vmatprep.subr.mxu0 0.0
  %1968 = vmatpush1.msra.mxu0 0.0
  %1969 = vmatprep.subr.mxu0 0.0
  %1970 = vmatpush1.msra.mxu0 0.0
  %1971 = vmatprep.subr.mxu0 0.0
  %1972 = vmatpush1.msra.mxu0 0.0
  %1973 = vmatprep.subr.mxu0 0.0
  %1974 = vmatpush1.msra.mxu0 0.0
  %1975 = vmatprep.subr.mxu0 0.0
  %1976 = vmatpush1.msra.mxu0 0.0
  %1977 = vmatprep.subr.mxu0 0.0
  %1978 = vmatpush1.msra.mxu0 0.0
  %1979 = vmatprep.subr.mxu0 0.0
  %1980 = vmatpush1.msra.mxu0 0.0
  %1981 = vmatprep.subr.mxu0 0.0
  %1982 = vmatpush1.msra.mxu0 0.0
  %1983 = vmatprep.subr.mxu0 0.0
  %1984 = vmatpush1.msra.mxu0 0.0
  %1985 = vmatprep.subr.mxu0 0.0
  %1986 = vmatpush1.msra.mxu0 %v1940
  %1987 = vmatprep.subr.mxu0 0.0
  %1988 = vmatpush2.msra.mxu0 0.0
  %1989 = vmatprep.subr.mxu0 0.0
  %1990 = vmatpush2.msra.mxu0 0.0
  %1991 = vmatprep.subr.mxu0 0.0
  %1992 = vmatpush2.msra.mxu0 0.0
  %1993 = vmatprep.subr.mxu0 0.0
  %1994 = vmatpush2.msra.mxu0 0.0
  %1995 = vmatprep.subr.mxu0 0.0
  %1996 = vmatpush2.msra.mxu0 0.0
  %1997 = vmatprep.subr.mxu0 0.0
  %1998 = vmatpush2.msra.mxu0 0.0
  %1999 = vmatprep.subr.mxu0 0.0
  %2000 = vmatpush2.msra.mxu0 0.0
  %2001 = vmatprep.subr.mxu0 0.0
  %2002 = vmatpush2.msra.mxu0 0.0
  %2003 = vmatprep.subr.mxu0 0.0
  %2004 = vmatpush2.msra.mxu0 0.0
  %2005 = vmatprep.subr.mxu0 0.0
  %2006 = vmatpush2.msra.mxu0 0.0
  %2007 = vmatprep.subr.mxu0 0.0
  %2008 = vmatpush2.msra.mxu0 0.0
  %2009 = vmatprep.subr.mxu0 0.0
  %2010 = vmatpush2.msra.mxu0 0.0
  %2011 = vmatprep.subr.mxu0 0.0
  %2012 = vmatpush2.msra.mxu0 0.0
  %2013 = vmatprep.subr.mxu0 0.0
  %2014 = vmatpush2.msra.mxu0 0.0
  %2015 = vmatprep.subr.mxu0 0.0
  %2016 = vmatpush2.msra.mxu0 0.0
  %2017 = vmatprep.subr.mxu0 0.0
  %2018 = vmatpush2.msra.mxu0 0.0
  %2019 = vmatprep.mubr.f32.mxu0 0.0
  %2020 = vmatmul.mubr.f32.gmra.mxu0 %v1950
  %v2021 = vpop.f32.mrf.mxu0
  %v2022 = vadd.f32 %v1946, %v2021
  %v2023 = vpop.f32.mrf.mxu0
  %2024 = vmatprep.mubr.f32.mxu0 0.0
  %2025 = vmatmul.mubr.f32.gmra.mxu0 %v1953
  %v2026 = vpop.f32.mrf.mxu0
  %v2027 = vadd.f32 %v1946, %v2026
  %v2028 = vpop.f32.mrf.mxu0
  %2029 = vdwg.mxu0
  %v2030 = vsub.f32 0.0, %v2022
  %v2031 = vsub.f32 0.0, %v2027
  %v2032 = vmul.f32 %v2030, 1.442695
  %v2033 = vpow.pop %v2032
  %v2034 = vmul.f32 %v2031, 1.442695
  %v2035 = vpow.pop %v2034
  %v2036 = vadd.f32 %v2033, 1.0
  %v2037 = vadd.f32 %v2035, 1.0
  %v2038 = vrcp.pop %v2036
  %v2039 = vmul.f32 1.0, %v2038
  %v2040 = vrcp.pop %v2037
  %v2041 = vmul.f32 1.0, %v2040
  %2042 = vst [vmem:[%s11] sm:$0xff] %v2039
  %2043 = vst [vmem:[%s11 + $0x8] sm:$0xff] %v2041
  // Predicated region
  $region46: #{reward2d_forward.1} parent=0 // pred_check
    _
  $region47: #{reward2d_forward.1} parent=0 // pred_check_branch
    %2045 = sbr.rel (0) target = $region49
  $region48: #{reward2d_forward.1} parent=0 // pred_region
    _
  $region49: #{reward2d_forward.1} parent=0 // pred_fallthru
    _
  // Predicated region
  $region50: #{reward2d_forward.1} parent=0 // pred_check
    _
  $region51: #{reward2d_forward.1} parent=0 // pred_check_branch
    %2047 = sbr.rel (0) target = $region53
  $region52: #{reward2d_forward.1} parent=0 // pred_region
    _
  $region53: #{reward2d_forward.1} parent=0 // pred_fallthru
    _

</llo_original>
